<compile_context>
chip_gen: v6e
topology: v6e:2x2x1
jax: 0.10.0
libtpu: 0.0.40
codegen_flags: <defaults>
</compile_context>

<pallas_src>
import functools

import jax
import jax.numpy as jnp
from jax.experimental import pallas as pl
from jax.experimental.pallas import tpu as pltpu


# ----------------------------------------------------------------------------
# Pallas kernels
# ----------------------------------------------------------------------------
def _matmul_kernel(a_ref, b_ref, o_ref):
    """Single-K-block matmul: o = a @ b (bf16 inputs, f32 accumulate)."""
    o_ref[...] = jnp.dot(a_ref[...], b_ref[...],
                         preferred_element_type=jnp.float32)


def _affine_act_kernel(x_ref, scale_ref, shift_ref, o_ref, *, act):
    """y = act(x * scale + shift) with per-column scale/shift (BN-apply / bias+tanh)."""
    y = x_ref[...] * scale_ref[...] + shift_ref[...]
    if act == "relu":
        y = jnp.maximum(y, 0.0)
    elif act == "tanh":
        y = jnp.tanh(y)
    o_ref[...] = y.astype(o_ref.dtype)


# ----------------------------------------------------------------------------
# Pallas wrappers
# ----------------------------------------------------------------------------
def _rup(x, m):
    return (x + m - 1) // m * m


def pallas_matmul(a, b):
    """(M, K) @ (K, Nc) on the MXU in bf16, f32 out.  Returns unpadded (M, Nc)."""
    M, K = a.shape
    _, Nc = b.shape
    a16 = a.astype(jnp.bfloat16)
    b16 = b.astype(jnp.bfloat16)

    Kp = _rup(K, 128)                       # K = IC (<= 1024 even at PyTorch defaults)
    if M <= 512:                            # whole M in one block when small
        Mp = _rup(M, 8)
        tm = Mp
    else:
        tm = 256
        Mp = _rup(M, tm)
    Np = _rup(Nc, 128)
    if Np <= 512:
        tn = Np
    elif Np % 512 == 0:
        tn = 512
    elif Np % 256 == 0:
        tn = 256
    else:
        tn = 128

    a_p = jnp.pad(a16, ((0, Mp - M), (0, Kp - K)))
    b_p = jnp.pad(b16, ((0, Kp - K), (0, Np - Nc)))

    out = pl.pallas_call(
        _matmul_kernel,
        out_shape=jax.ShapeDtypeStruct((Mp, Np), jnp.float32),
        grid_spec=pltpu.PrefetchScalarGridSpec(
            num_scalar_prefetch=0,
            grid=(Mp // tm, Np // tn),
            in_specs=[
                pl.BlockSpec((tm, Kp), lambda i, j: (i, 0)),
                pl.BlockSpec((Kp, tn), lambda i, j: (0, j)),
            ],
            out_specs=pl.BlockSpec((tm, tn), lambda i, j: (i, j)),
        ),
        compiler_params=pltpu.CompilerParams(
            dimension_semantics=("parallel", "parallel"),
            vmem_limit_bytes=32 * 1024 * 1024),
    )(a_p, b_p)
    return out[:M, :Nc]


def pallas_affine_act(x2d, scale_row, shift_row, act):
    """Per-column affine + activation on a lane-dense 2-D activation."""
    R, C = x2d.shape
    Cp = _rup(C, 128)
    if R <= 1024:                           # whole activation in a single block
        Rp = _rup(R, 8)
        tr = Rp
    else:
        tr = 1024
        Rp = _rup(R, tr)

    x_p = jnp.pad(x2d.astype(jnp.float32), ((0, Rp - R), (0, Cp - C)))
    scale_p = jnp.pad(scale_row.astype(jnp.float32), (0, Cp - C)).reshape(1, Cp)
    shift_p = jnp.pad(shift_row.astype(jnp.float32), (0, Cp - C)).reshape(1, Cp)

    kern = functools.partial(_affine_act_kernel, act=act)
    out = pl.pallas_call(
        kern,
        out_shape=jax.ShapeDtypeStruct((Rp, Cp), jnp.float32),
        grid_spec=pltpu.PrefetchScalarGridSpec(
            num_scalar_prefetch=0,
            grid=(Rp // tr,),
            in_specs=[
                pl.BlockSpec((tr, Cp), lambda i: (i, 0)),
                pl.BlockSpec((1, Cp), lambda i: (0, 0)),
                pl.BlockSpec((1, Cp), lambda i: (0, 0)),
            ],
            out_specs=pl.BlockSpec((tr, Cp), lambda i: (i, 0)),
        ),
        compiler_params=pltpu.CompilerParams(
            dimension_semantics=("parallel",),
            vmem_limit_bytes=32 * 1024 * 1024),
    )(x_p, scale_p, shift_p)
    return out[:R, :C]


# ----------------------------------------------------------------------------
# ConvTranspose2d = dense expansion matmul (Pallas) + col2im overlap-add (glue)
# ----------------------------------------------------------------------------
def _col2im(z6, stride, pad, OH, OW):
    """Overlap-add: z6[n,ih,iw,kh,kw,oc] -> y[n, ih*s - p + kh, iw*s - p + kw, oc]."""
    N, H, W, K, _, OC = z6.shape
    Hf = (H - 1) * stride + K
    Wf = (W - 1) * stride + K
    y = jnp.zeros((N, Hf, Wf, OC), z6.dtype)
    for kh in range(K):
        for kw in range(K):
            y = y.at[:, kh:kh + (H - 1) * stride + 1:stride,
                        kw:kw + (W - 1) * stride + 1:stride, :].add(
                z6[:, :, :, kh, kw, :])
    return y[:, pad:pad + OH, pad:pad + OW, :]


def conv_transpose2d_pallas(x_nhwc, w_t, stride, padding):
    """ConvTranspose2d WITHOUT bias.  x: (N,H,W,IC); w_t: PyTorch (IC,OC,kH,kW)."""
    N, H, W, IC = x_nhwc.shape
    OC = w_t.shape[1]
    K = w_t.shape[-1]
    OH = (H - 1) * stride - 2 * padding + K
    OW = (W - 1) * stride - 2 * padding + K

    a = x_nhwc.reshape(N * H * W, IC)                          # raw activation, no im2col
    bmat = jnp.transpose(w_t, (0, 2, 3, 1)).reshape(IC, K * K * OC)  # (ic) x (kh,kw,oc)

    z = pallas_matmul(a, bmat)                                 # (N*H*W, K*K*OC) f32
    z6 = z.reshape(N, H, W, K, K, OC)
    return _col2im(z6, stride, padding, OH, OW)                # (N, OH, OW, OC)


# ----------------------------------------------------------------------------
# Generator: parameters + forward
# ----------------------------------------------------------------------------
def init_generator_params(key, channels, latent_dim, h_channels, kernel_size=4):
    convs = []
    in_c = latent_dim
    stride, pad = 1, 0
    for out_c in h_channels:
        # Faithful to PyTorch: compares channel count to latent_dim.
        pad = 0 if in_c == latent_dim else 1
        stride = 1 if in_c == latent_dim else 2
        key, k1, k2 = jax.random.split(key, 3)
        convs.append(dict(
            w=jax.random.normal(k1, (in_c, out_c, kernel_size, kernel_size), jnp.float32) * 0.05,
            b=jax.random.normal(k2, (out_c,), jnp.float32) * 0.05,
            stride=stride, pad=pad,
            gamma=jnp.ones((out_c,), jnp.float32),      # BatchNorm2d default init
            beta=jnp.zeros((out_c,), jnp.float32),
        ))
        in_c = out_c
    # final ConvTranspose2d reuses the loop-leaked stride/pad (as in the PyTorch code)
    key, k1, k2 = jax.random.split(key, 3)
    convs.append(dict(
        w=jax.random.normal(k1, (in_c, channels, kernel_size, kernel_size), jnp.float32) * 0.05,
        b=jax.random.normal(k2, (channels,), jnp.float32) * 0.05,
        stride=stride, pad=pad, gamma=None, beta=None,
    ))
    return dict(convs=convs)


def generator_forward(x_nchw, params):
    """Forward pass. Input/output NCHW (PyTorch convention)."""
    x = jnp.transpose(x_nchw, (0, 2, 3, 1)).astype(jnp.float32)   # -> NHWC
    convs = params["convs"]
    n_layers = len(convs)
    for li, layer in enumerate(convs):
        w, b, s, p = layer["w"], layer["b"], layer["stride"], layer["pad"]
        OC = w.shape[1]
        y_conv = conv_transpose2d_pallas(x, w, s, p)              # no bias yet
        N, OH, OW, _ = y_conv.shape

        if li < n_layers - 1:
            # BatchNorm2d (training mode, biased batch stats). The ConvTranspose
            # bias cancels exactly under train-mode BN, so it is omitted.
            mean = jnp.mean(y_conv, axis=(0, 1, 2))
            var = jnp.mean(jnp.square(y_conv - mean), axis=(0, 1, 2))
            scale = layer["gamma"] * jax.lax.rsqrt(var + 1e-5)
            shift = layer["beta"] - mean * scale
            act = "relu"
        else:
            scale = jnp.ones((OC,), jnp.float32)
            shift = b.astype(jnp.float32)     # conv bias folded into the tanh epilogue
            act = "tanh"

        # Lane-dense layout (N*OH, OW*OC) for the elementwise kernel.
        y2d = y_conv.reshape(N * OH, OW * OC)
        scale_row = jnp.tile(scale, OW)
        shift_row = jnp.tile(shift, OW)
        out2d = pallas_affine_act(y2d, scale_row, shift_row, act)
        x = out2d.reshape(N, OH, OW, OC)
    return jnp.transpose(x, (0, 3, 1, 2))                          # -> NCHW


# pure-JAX reference (bf16 conv inputs to match the bf16 MXU path)
def generator_reference(x_nchw, params):
    x = jnp.transpose(x_nchw, (0, 2, 3, 1)).astype(jnp.float32)
    convs = params["convs"]
    for li, layer in enumerate(convs):
        w, b, s, p = layer["w"], layer["b"], layer["stride"], layer["pad"]
        K = w.shape[-1]
        w_hwio = jnp.transpose(w[:, :, ::-1, ::-1], (2, 3, 0, 1))
        y = jax.lax.conv_general_dilated(
            x.astype(jnp.bfloat16), w_hwio.astype(jnp.bfloat16),
            window_strides=(1, 1),
            padding=[(K - 1 - p, K - 1 - p)] * 2, lhs_dilation=(s, s),
            dimension_numbers=("NHWC", "HWIO", "NHWC"),
            preferred_element_type=jnp.float32) + b
        if li < len(convs) - 1:
            mean = jnp.mean(y, axis=(0, 1, 2))
            var = jnp.mean(jnp.square(y - mean), axis=(0, 1, 2))
            y = (y - mean) * jax.lax.rsqrt(var + 1e-5) * layer["gamma"] + layer["beta"]
            y = jnp.maximum(y, 0.0)
        else:
            y = jnp.tanh(y)
        x = y
    return jnp.transpose(x, (0, 3, 1, 2))


if __name__ == "__main__":
    # Small shapes consistent with the module: latent 1x1 spatial input.
    # h_channels deliberately disjoint from latent_dim so the PyTorch
    # `in_channels == latent_dim` quirk keeps stride=2/pad=1 after layer 1
    # (1x1 -> 4 -> 8 -> 16 -> 32 spatial).
    batch = 2
    latent_dim = 32
    h_channels = [64, 48, 24]
    channels = 3

    key = jax.random.PRNGKey(0)
    key, kx = jax.random.split(key)
    params = init_generator_params(key, channels, latent_dim, h_channels, kernel_size=4)
    x = jax.random.normal(kx, (batch, latent_dim, 1, 1), jnp.float32)  # NCHW

    fwd = jax.jit(lambda xx: generator_forward(xx, params))
    ref_fn = jax.jit(lambda xx: generator_reference(xx, params))

    out = jax.block_until_ready(fwd(x))
    assert out.shape == (batch, channels, 32, 32), out.shape

    ref = jax.block_until_ready(ref_fn(x))
    assert bool(jnp.all(jnp.isfinite(out)))
    max_err = float(jnp.max(jnp.abs(out - ref)))
    assert bool(jnp.allclose(out, ref, atol=2e-2, rtol=2e-2)), max_err

    print("KERNEL_OK")
</pallas_src>

<mosaic_0001>
module attributes {stable_mosaic.version = 11 : i64} {
  func.func @_matmul_kernel(%arg0: i32, %arg1: i32, %arg2: memref<8x128xbf16, #tpu.memory_space<vmem>>, %arg3: memref<128x512xbf16, #tpu.memory_space<vmem>>, %arg4: memref<8x512xf32, #tpu.memory_space<vmem>>) attributes {dimension_semantics = [#tpu.dimension_semantics<parallel>, #tpu.dimension_semantics<parallel>], iteration_bounds = array<i64: 1, 2>, scalar_prefetch = 0 : i64, scratch_operands = 0 : i64, tpu.core_type = #tpu.core_type<tc>, window_params = [{transform_indices = @transform_0, window_bounds = array<i64: 8, 128>}, {transform_indices = @transform_1, window_bounds = array<i64: 128, 512>}, {transform_indices = @transform_2, window_bounds = array<i64: 8, 512>}]} {
    %c0 = arith.constant 0 : index
    %c0_0 = arith.constant 0 : index
    %0 = vector.load %arg2[%c0, %c0_0] : memref<8x128xbf16, #tpu.memory_space<vmem>>, vector<8x128xbf16>
    %c0_1 = arith.constant 0 : index
    %c0_2 = arith.constant 0 : index
    %1 = vector.load %arg3[%c0_1, %c0_2] : memref<128x512xbf16, #tpu.memory_space<vmem>>, vector<128x512xbf16>
    %cst = arith.constant dense<0.000000e+00> : vector<8x512xf32>
    %2 = tpu.matmul %0, %1, %cst {dimension_numbers = #tpu.dot_dimension_numbers<[1], [0], [0], [1], [0, 0, 1, 1], [], []>} : vector<8x128xbf16>, vector<128x512xbf16>, vector<8x512xf32> -> vector<8x512xf32>
    %c0_3 = arith.constant 0 : index
    %c0_4 = arith.constant 0 : index
    %3 = vector.load %arg4[%c0_3, %c0_4] : memref<8x512xf32, #tpu.memory_space<vmem>>, vector<8x512xf32>
    tpu.vector_store %arg4[%c0_3, %c0_4], %2 {strides = array<i32>} : memref<8x512xf32, #tpu.memory_space<vmem>>, vector<8x512xf32>,
    return
  }
  func.func @transform_0(%arg0: i32, %arg1: i32) -> (i32, i32) {
    %c0_i32 = arith.constant 0 : i32
    %c0_i32_0 = arith.constant 0 : i32
    return %arg0, %c0_i32 : i32, i32
  }
  func.func @transform_1(%arg0: i32, %arg1: i32) -> (i32, i32) {
    %c0_i32 = arith.constant 0 : i32
    %c0_i32_0 = arith.constant 0 : i32
    return %c0_i32, %arg1 : i32, i32
  }
  func.func @transform_2(%arg0: i32, %arg1: i32) -> (i32, i32) {
    %c0_i32 = arith.constant 0 : i32
    return %arg0, %arg1 : i32, i32
  }
}

module attributes {stable_mosaic.version = 11 : i64} {
  func.func @_affine_act_kernel(%arg0: i32, %arg1: memref<8x256xf32, #tpu.memory_space<vmem>>, %arg2: memref<1x256xf32, #tpu.memory_space<vmem>>, %arg3: memref<1x256xf32, #tpu.memory_space<vmem>>, %arg4: memref<8x256xf32, #tpu.memory_space<vmem>>) attributes {dimension_semantics = [#tpu.dimension_semantics<parallel>], iteration_bounds = array<i64: 1>, scalar_prefetch = 0 : i64, scratch_operands = 0 : i64, tpu.core_type = #tpu.core_type<tc>, window_params = [{transform_indices = @transform_0, window_bounds = array<i64: 8, 256>}, {pipeline_mode = #tpu.pipeline_mode<synchronous>, transform_indices = @transform_1, window_bounds = array<i64: 1, 256>}, {pipeline_mode = #tpu.pipeline_mode<synchronous>, transform_indices = @transform_2, window_bounds = array<i64: 1, 256>}, {transform_indices = @transform_3, window_bounds = array<i64: 8, 256>}]} {
    %c0 = arith.constant 0 : index
    %c0_0 = arith.constant 0 : index
    %0 = vector.load %arg1[%c0, %c0_0] : memref<8x256xf32, #tpu.memory_space<vmem>>, vector<8x256xf32>
    %c0_1 = arith.constant 0 : index
    %c0_2 = arith.constant 0 : index
    %1 = vector.load %arg2[%c0_1, %c0_2] : memref<1x256xf32, #tpu.memory_space<vmem>>, vector<1x256xf32>
    %2 = vector.broadcast %1 : vector<1x256xf32> to vector<8x256xf32>
    %3 = arith.mulf %0, %2 : vector<8x256xf32>
    %c0_3 = arith.constant 0 : index
    %c0_4 = arith.constant 0 : index
    %4 = vector.load %arg3[%c0_3, %c0_4] : memref<1x256xf32, #tpu.memory_space<vmem>>, vector<1x256xf32>
    %5 = vector.broadcast %4 : vector<1x256xf32> to vector<8x256xf32>
    %6 = arith.addf %3, %5 : vector<8x256xf32>
    %cst = arith.constant 0.000000e+00 : f32
    %7 = vector.broadcast %cst : f32 to vector<8x256xf32>
    %8 = arith.maximumf %6, %7 : vector<8x256xf32>
    %c0_5 = arith.constant 0 : index
    %c0_6 = arith.constant 0 : index
    %9 = vector.load %arg4[%c0_5, %c0_6] : memref<8x256xf32, #tpu.memory_space<vmem>>, vector<8x256xf32>
    tpu.vector_store %arg4[%c0_5, %c0_6], %8 {strides = array<i32>} : memref<8x256xf32, #tpu.memory_space<vmem>>, vector<8x256xf32>,
    return
  }
  func.func @transform_0(%arg0: i32) -> (i32, i32) {
    %c0_i32 = arith.constant 0 : i32
    %c0_i32_0 = arith.constant 0 : i32
    return %arg0, %c0_i32 : i32, i32
  }
  func.func @transform_1(%arg0: i32) -> (i32, i32) {
    %c0_i32 = arith.constant 0 : i32
    %c0_i32_0 = arith.constant 0 : i32
    %c0_i32_1 = arith.constant 0 : i32
    return %c0_i32, %c0_i32_0 : i32, i32
  }
  func.func @transform_2(%arg0: i32) -> (i32, i32) {
    %c0_i32 = arith.constant 0 : i32
    %c0_i32_0 = arith.constant 0 : i32
    %c0_i32_1 = arith.constant 0 : i32
    return %c0_i32, %c0_i32_0 : i32, i32
  }
  func.func @transform_3(%arg0: i32) -> (i32, i32) {
    %c0_i32 = arith.constant 0 : i32
    %c0_i32_0 = arith.constant 0 : i32
    return %arg0, %c0_i32 : i32, i32
  }
}

module attributes {stable_mosaic.version = 11 : i64} {
  func.func @_matmul_kernel(%arg0: i32, %arg1: i32, %arg2: memref<32x128xbf16, #tpu.memory_space<vmem>>, %arg3: memref<128x256xbf16, #tpu.memory_space<vmem>>, %arg4: memref<32x256xf32, #tpu.memory_space<vmem>>) attributes {dimension_semantics = [#tpu.dimension_semantics<parallel>, #tpu.dimension_semantics<parallel>], iteration_bounds = array<i64: 1, 3>, scalar_prefetch = 0 : i64, scratch_operands = 0 : i64, tpu.core_type = #tpu.core_type<tc>, window_params = [{transform_indices = @transform_0, window_bounds = array<i64: 32, 128>}, {transform_indices = @transform_1, window_bounds = array<i64: 128, 256>}, {transform_indices = @transform_2, window_bounds = array<i64: 32, 256>}]} {
    %c0 = arith.constant 0 : index
    %c0_0 = arith.constant 0 : index
    %0 = vector.load %arg2[%c0, %c0_0] : memref<32x128xbf16, #tpu.memory_space<vmem>>, vector<32x128xbf16>
    %c0_1 = arith.constant 0 : index
    %c0_2 = arith.constant 0 : index
    %1 = vector.load %arg3[%c0_1, %c0_2] : memref<128x256xbf16, #tpu.memory_space<vmem>>, vector<128x256xbf16>
    %cst = arith.constant dense<0.000000e+00> : vector<32x256xf32>
    %2 = tpu.matmul %0, %1, %cst {dimension_numbers = #tpu.dot_dimension_numbers<[1], [0], [0], [1], [0, 0, 1, 1], [], []>} : vector<32x128xbf16>, vector<128x256xbf16>, vector<32x256xf32> -> vector<32x256xf32>
    %c0_3 = arith.constant 0 : index
    %c0_4 = arith.constant 0 : index
    %3 = vector.load %arg4[%c0_3, %c0_4] : memref<32x256xf32, #tpu.memory_space<vmem>>, vector<32x256xf32>
    tpu.vector_store %arg4[%c0_3, %c0_4], %2 {strides = array<i32>} : memref<32x256xf32, #tpu.memory_space<vmem>>, vector<32x256xf32>,
    return
  }
  func.func @transform_0(%arg0: i32, %arg1: i32) -> (i32, i32) {
    %c0_i32 = arith.constant 0 : i32
    %c0_i32_0 = arith.constant 0 : i32
    return %arg0, %c0_i32 : i32, i32
  }
  func.func @transform_1(%arg0: i32, %arg1: i32) -> (i32, i32) {
    %c0_i32 = arith.constant 0 : i32
    %c0_i32_0 = arith.constant 0 : i32
    return %c0_i32, %arg1 : i32, i32
  }
  func.func @transform_2(%arg0: i32, %arg1: i32) -> (i32, i32) {
    %c0_i32 = arith.constant 0 : i32
    return %arg0, %arg1 : i32, i32
  }
}

module attributes {stable_mosaic.version = 11 : i64} {
  func.func @_affine_act_kernel(%arg0: i32, %arg1: memref<16x384xf32, #tpu.memory_space<vmem>>, %arg2: memref<1x384xf32, #tpu.memory_space<vmem>>, %arg3: memref<1x384xf32, #tpu.memory_space<vmem>>, %arg4: memref<16x384xf32, #tpu.memory_space<vmem>>) attributes {dimension_semantics = [#tpu.dimension_semantics<parallel>], iteration_bounds = array<i64: 1>, scalar_prefetch = 0 : i64, scratch_operands = 0 : i64, tpu.core_type = #tpu.core_type<tc>, window_params = [{transform_indices = @transform_0, window_bounds = array<i64: 16, 384>}, {pipeline_mode = #tpu.pipeline_mode<synchronous>, transform_indices = @transform_1, window_bounds = array<i64: 1, 384>}, {pipeline_mode = #tpu.pipeline_mode<synchronous>, transform_indices = @transform_2, window_bounds = array<i64: 1, 384>}, {transform_indices = @transform_3, window_bounds = array<i64: 16, 384>}]} {
    %c0 = arith.constant 0 : index
    %c0_0 = arith.constant 0 : index
    %0 = vector.load %arg1[%c0, %c0_0] : memref<16x384xf32, #tpu.memory_space<vmem>>, vector<16x384xf32>
    %c0_1 = arith.constant 0 : index
    %c0_2 = arith.constant 0 : index
    %1 = vector.load %arg2[%c0_1, %c0_2] : memref<1x384xf32, #tpu.memory_space<vmem>>, vector<1x384xf32>
    %2 = vector.broadcast %1 : vector<1x384xf32> to vector<16x384xf32>
    %3 = arith.mulf %0, %2 : vector<16x384xf32>
    %c0_3 = arith.constant 0 : index
    %c0_4 = arith.constant 0 : index
    %4 = vector.load %arg3[%c0_3, %c0_4] : memref<1x384xf32, #tpu.memory_space<vmem>>, vector<1x384xf32>
    %5 = vector.broadcast %4 : vector<1x384xf32> to vector<16x384xf32>
    %6 = arith.addf %3, %5 : vector<16x384xf32>
    %cst = arith.constant 0.000000e+00 : f32
    %7 = vector.broadcast %cst : f32 to vector<16x384xf32>
    %8 = arith.maximumf %6, %7 : vector<16x384xf32>
    %c0_5 = arith.constant 0 : index
    %c0_6 = arith.constant 0 : index
    %9 = vector.load %arg4[%c0_5, %c0_6] : memref<16x384xf32, #tpu.memory_space<vmem>>, vector<16x384xf32>
    tpu.vector_store %arg4[%c0_5, %c0_6], %8 {strides = array<i32>} : memref<16x384xf32, #tpu.memory_space<vmem>>, vector<16x384xf32>,
    return
  }
  func.func @transform_0(%arg0: i32) -> (i32, i32) {
    %c0_i32 = arith.constant 0 : i32
    %c0_i32_0 = arith.constant 0 : i32
    return %arg0, %c0_i32 : i32, i32
  }
  func.func @transform_1(%arg0: i32) -> (i32, i32) {
    %c0_i32 = arith.constant 0 : i32
    %c0_i32_0 = arith.constant 0 : i32
    %c0_i32_1 = arith.constant 0 : i32
    return %c0_i32, %c0_i32_0 : i32, i32
  }
  func.func @transform_2(%arg0: i32) -> (i32, i32) {
    %c0_i32 = arith.constant 0 : i32
    %c0_i32_0 = arith.constant 0 : i32
    %c0_i32_1 = arith.constant 0 : i32
    return %c0_i32, %c0_i32_0 : i32, i32
  }
  func.func @transform_3(%arg0: i32) -> (i32, i32) {
    %c0_i32 = arith.constant 0 : i32
    %c0_i32_0 = arith.constant 0 : i32
    return %arg0, %c0_i32 : i32, i32
  }
}

module attributes {stable_mosaic.version = 11 : i64} {
  func.func @_matmul_kernel(%arg0: i32, %arg1: i32, %arg2: memref<128x128xbf16, #tpu.memory_space<vmem>>, %arg3: memref<128x384xbf16, #tpu.memory_space<vmem>>, %arg4: memref<128x384xf32, #tpu.memory_space<vmem>>) attributes {dimension_semantics = [#tpu.dimension_semantics<parallel>, #tpu.dimension_semantics<parallel>], iteration_bounds = array<i64: 1, 1>, scalar_prefetch = 0 : i64, scratch_operands = 0 : i64, tpu.core_type = #tpu.core_type<tc>, window_params = [{transform_indices = @transform_0, window_bounds = array<i64: 128, 128>}, {transform_indices = @transform_1, window_bounds = array<i64: 128, 384>}, {transform_indices = @transform_2, window_bounds = array<i64: 128, 384>}]} {
    %c0 = arith.constant 0 : index
    %c0_0 = arith.constant 0 : index
    %0 = vector.load %arg2[%c0, %c0_0] : memref<128x128xbf16, #tpu.memory_space<vmem>>, vector<128x128xbf16>
    %c0_1 = arith.constant 0 : index
    %c0_2 = arith.constant 0 : index
    %1 = vector.load %arg3[%c0_1, %c0_2] : memref<128x384xbf16, #tpu.memory_space<vmem>>, vector<128x384xbf16>
    %cst = arith.constant dense<0.000000e+00> : vector<128x384xf32>
    %2 = tpu.matmul %0, %1, %cst {dimension_numbers = #tpu.dot_dimension_numbers<[1], [0], [0], [1], [0, 0, 1, 1], [], []>} : vector<128x128xbf16>, vector<128x384xbf16>, vector<128x384xf32> -> vector<128x384xf32>
    %c0_3 = arith.constant 0 : index
    %c0_4 = arith.constant 0 : index
    %3 = vector.load %arg4[%c0_3, %c0_4] : memref<128x384xf32, #tpu.memory_space<vmem>>, vector<128x384xf32>
    tpu.vector_store %arg4[%c0_3, %c0_4], %2 {strides = array<i32>} : memref<128x384xf32, #tpu.memory_space<vmem>>, vector<128x384xf32>,
    return
  }
  func.func @transform_0(%arg0: i32, %arg1: i32) -> (i32, i32) {
    %c0_i32 = arith.constant 0 : i32
    %c0_i32_0 = arith.constant 0 : i32
    return %arg0, %c0_i32 : i32, i32
  }
  func.func @transform_1(%arg0: i32, %arg1: i32) -> (i32, i32) {
    %c0_i32 = arith.constant 0 : i32
    %c0_i32_0 = arith.constant 0 : i32
    return %c0_i32, %arg1 : i32, i32
  }
  func.func @transform_2(%arg0: i32, %arg1: i32) -> (i32, i32) {
    %c0_i32 = arith.constant 0 : i32
    return %arg0, %arg1 : i32, i32
  }
}

module attributes {stable_mosaic.version = 11 : i64} {
  func.func @_affine_act_kernel(%arg0: i32, %arg1: memref<32x384xf32, #tpu.memory_space<vmem>>, %arg2: memref<1x384xf32, #tpu.memory_space<vmem>>, %arg3: memref<1x384xf32, #tpu.memory_space<vmem>>, %arg4: memref<32x384xf32, #tpu.memory_space<vmem>>) attributes {dimension_semantics = [#tpu.dimension_semantics<parallel>], iteration_bounds = array<i64: 1>, scalar_prefetch = 0 : i64, scratch_operands = 0 : i64, tpu.core_type = #tpu.core_type<tc>, window_params = [{transform_indices = @transform_0, window_bounds = array<i64: 32, 384>}, {pipeline_mode = #tpu.pipeline_mode<synchronous>, transform_indices = @transform_1, window_bounds = array<i64: 1, 384>}, {pipeline_mode = #tpu.pipeline_mode<synchronous>, transform_indices = @transform_2, window_bounds = array<i64: 1, 384>}, {transform_indices = @transform_3, window_bounds = array<i64: 32, 384>}]} {
    %c0 = arith.constant 0 : index
    %c0_0 = arith.constant 0 : index
    %0 = vector.load %arg1[%c0, %c0_0] : memref<32x384xf32, #tpu.memory_space<vmem>>, vector<32x384xf32>
    %c0_1 = arith.constant 0 : index
    %c0_2 = arith.constant 0 : index
    %1 = vector.load %arg2[%c0_1, %c0_2] : memref<1x384xf32, #tpu.memory_space<vmem>>, vector<1x384xf32>
    %2 = vector.broadcast %1 : vector<1x384xf32> to vector<32x384xf32>
    %3 = arith.mulf %0, %2 : vector<32x384xf32>
    %c0_3 = arith.constant 0 : index
    %c0_4 = arith.constant 0 : index
    %4 = vector.load %arg3[%c0_3, %c0_4] : memref<1x384xf32, #tpu.memory_space<vmem>>, vector<1x384xf32>
    %5 = vector.broadcast %4 : vector<1x384xf32> to vector<32x384xf32>
    %6 = arith.addf %3, %5 : vector<32x384xf32>
    %cst = arith.constant 0.000000e+00 : f32
    %7 = vector.broadcast %cst : f32 to vector<32x384xf32>
    %8 = arith.maximumf %6, %7 : vector<32x384xf32>
    %c0_5 = arith.constant 0 : index
    %c0_6 = arith.constant 0 : index
    %9 = vector.load %arg4[%c0_5, %c0_6] : memref<32x384xf32, #tpu.memory_space<vmem>>, vector<32x384xf32>
    tpu.vector_store %arg4[%c0_5, %c0_6], %8 {strides = array<i32>} : memref<32x384xf32, #tpu.memory_space<vmem>>, vector<32x384xf32>,
    return
  }
  func.func @transform_0(%arg0: i32) -> (i32, i32) {
    %c0_i32 = arith.constant 0 : i32
    %c0_i32_0 = arith.constant 0 : i32
    return %arg0, %c0_i32 : i32, i32
  }
  func.func @transform_1(%arg0: i32) -> (i32, i32) {
    %c0_i32 = arith.constant 0 : i32
    %c0_i32_0 = arith.constant 0 : i32
    %c0_i32_1 = arith.constant 0 : i32
    return %c0_i32, %c0_i32_0 : i32, i32
  }
  func.func @transform_2(%arg0: i32) -> (i32, i32) {
    %c0_i32 = arith.constant 0 : i32
    %c0_i32_0 = arith.constant 0 : i32
    %c0_i32_1 = arith.constant 0 : i32
    return %c0_i32, %c0_i32_0 : i32, i32
  }
  func.func @transform_3(%arg0: i32) -> (i32, i32) {
    %c0_i32 = arith.constant 0 : i32
    %c0_i32_0 = arith.constant 0 : i32
    return %arg0, %c0_i32 : i32, i32
  }
}

module attributes {stable_mosaic.version = 11 : i64} {
  func.func @_matmul_kernel(%arg0: i32, %arg1: i32, %arg2: memref<512x128xbf16, #tpu.memory_space<vmem>>, %arg3: memref<128x128xbf16, #tpu.memory_space<vmem>>, %arg4: memref<512x128xf32, #tpu.memory_space<vmem>>) attributes {dimension_semantics = [#tpu.dimension_semantics<parallel>, #tpu.dimension_semantics<parallel>], iteration_bounds = array<i64: 1, 1>, scalar_prefetch = 0 : i64, scratch_operands = 0 : i64, tpu.core_type = #tpu.core_type<tc>, window_params = [{transform_indices = @transform_0, window_bounds = array<i64: 512, 128>}, {transform_indices = @transform_1, window_bounds = array<i64: 128, 128>}, {transform_indices = @transform_2, window_bounds = array<i64: 512, 128>}]} {
    %c0 = arith.constant 0 : index
    %c0_0 = arith.constant 0 : index
    %0 = vector.load %arg2[%c0, %c0_0] : memref<512x128xbf16, #tpu.memory_space<vmem>>, vector<512x128xbf16>
    %c0_1 = arith.constant 0 : index
    %c0_2 = arith.constant 0 : index
    %1 = vector.load %arg3[%c0_1, %c0_2] : memref<128x128xbf16, #tpu.memory_space<vmem>>, vector<128x128xbf16>
    %cst = arith.constant dense<0.000000e+00> : vector<512x128xf32>
    %2 = tpu.matmul %0, %1, %cst {dimension_numbers = #tpu.dot_dimension_numbers<[1], [0], [0], [1], [0, 0, 1, 1], [], []>} : vector<512x128xbf16>, vector<128x128xbf16>, vector<512x128xf32> -> vector<512x128xf32>
    %c0_3 = arith.constant 0 : index
    %c0_4 = arith.constant 0 : index
    %3 = vector.load %arg4[%c0_3, %c0_4] : memref<512x128xf32, #tpu.memory_space<vmem>>, vector<512x128xf32>
    tpu.vector_store %arg4[%c0_3, %c0_4], %2 {strides = array<i32>} : memref<512x128xf32, #tpu.memory_space<vmem>>, vector<512x128xf32>,
    return
  }
  func.func @transform_0(%arg0: i32, %arg1: i32) -> (i32, i32) {
    %c0_i32 = arith.constant 0 : i32
    %c0_i32_0 = arith.constant 0 : i32
    return %arg0, %c0_i32 : i32, i32
  }
  func.func @transform_1(%arg0: i32, %arg1: i32) -> (i32, i32) {
    %c0_i32 = arith.constant 0 : i32
    %c0_i32_0 = arith.constant 0 : i32
    return %c0_i32, %arg1 : i32, i32
  }
  func.func @transform_2(%arg0: i32, %arg1: i32) -> (i32, i32) {
    %c0_i32 = arith.constant 0 : i32
    return %arg0, %arg1 : i32, i32
  }
}

module attributes {stable_mosaic.version = 11 : i64} {
  func.func @_affine_act_kernel(%arg0: i32, %arg1: memref<64x128xf32, #tpu.memory_space<vmem>>, %arg2: memref<1x128xf32, #tpu.memory_space<vmem>>, %arg3: memref<1x128xf32, #tpu.memory_space<vmem>>, %arg4: memref<64x128xf32, #tpu.memory_space<vmem>>) attributes {dimension_semantics = [#tpu.dimension_semantics<parallel>], iteration_bounds = array<i64: 1>, scalar_prefetch = 0 : i64, scratch_operands = 0 : i64, tpu.core_type = #tpu.core_type<tc>, window_params = [{transform_indices = @transform_0, window_bounds = array<i64: 64, 128>}, {pipeline_mode = #tpu.pipeline_mode<synchronous>, transform_indices = @transform_1, window_bounds = array<i64: 1, 128>}, {pipeline_mode = #tpu.pipeline_mode<synchronous>, transform_indices = @transform_2, window_bounds = array<i64: 1, 128>}, {transform_indices = @transform_3, window_bounds = array<i64: 64, 128>}]} {
    %c0 = arith.constant 0 : index
    %c0_0 = arith.constant 0 : index
    %0 = vector.load %arg1[%c0, %c0_0] : memref<64x128xf32, #tpu.memory_space<vmem>>, vector<64x128xf32>
    %c0_1 = arith.constant 0 : index
    %c0_2 = arith.constant 0 : index
    %1 = vector.load %arg2[%c0_1, %c0_2] : memref<1x128xf32, #tpu.memory_space<vmem>>, vector<1x128xf32>
    %2 = vector.broadcast %1 : vector<1x128xf32> to vector<64x128xf32>
    %3 = arith.mulf %0, %2 : vector<64x128xf32>
    %c0_3 = arith.constant 0 : index
    %c0_4 = arith.constant 0 : index
    %4 = vector.load %arg3[%c0_3, %c0_4] : memref<1x128xf32, #tpu.memory_space<vmem>>, vector<1x128xf32>
    %5 = vector.broadcast %4 : vector<1x128xf32> to vector<64x128xf32>
    %6 = arith.addf %3, %5 : vector<64x128xf32>
    %7 = math.tanh %6 : vector<64x128xf32>
    %c0_5 = arith.constant 0 : index
    %c0_6 = arith.constant 0 : index
    %8 = vector.load %arg4[%c0_5, %c0_6] : memref<64x128xf32, #tpu.memory_space<vmem>>, vector<64x128xf32>
    tpu.vector_store %arg4[%c0_5, %c0_6], %7 {strides = array<i32>} : memref<64x128xf32, #tpu.memory_space<vmem>>, vector<64x128xf32>,
    return
  }
  func.func @transform_0(%arg0: i32) -> (i32, i32) {
    %c0_i32 = arith.constant 0 : i32
    %c0_i32_0 = arith.constant 0 : i32
    return %arg0, %c0_i32 : i32, i32
  }
  func.func @transform_1(%arg0: i32) -> (i32, i32) {
    %c0_i32 = arith.constant 0 : i32
    %c0_i32_0 = arith.constant 0 : i32
    %c0_i32_1 = arith.constant 0 : i32
    return %c0_i32, %c0_i32_0 : i32, i32
  }
  func.func @transform_2(%arg0: i32) -> (i32, i32) {
    %c0_i32 = arith.constant 0 : i32
    %c0_i32_0 = arith.constant 0 : i32
    %c0_i32_1 = arith.constant 0 : i32
    return %c0_i32, %c0_i32_0 : i32, i32
  }
  func.func @transform_3(%arg0: i32) -> (i32, i32) {
    %c0_i32 = arith.constant 0 : i32
    %c0_i32_0 = arith.constant 0 : i32
    return %arg0, %c0_i32 : i32, i32
  }
}

</mosaic_0001>

<llo_original>
// kernel: tile.39
$region0: #{tile.39}
  #allocation0 [shape = 's32[1]{0}', space=sflag, size = 0x4, scoped, tag = 'scoped memory for tile.39']
  %s0 = inlined_call_operand.vmem [shape: f32[64], index: 0, kind: input, shape index: {}]
  %s1 = inlined_call_operand.vmem [shape: f32[4,64], index: 1, kind: output, shape index: {}]
  // Predicated region
  $region2: #{tile.39} parent=0 // pred_check
    _
  $region3: #{tile.39} parent=0 // pred_check_branch
    %3 = sbr.rel (0) target = $region5
  $region4: #{tile.39} parent=0 // pred_region
    _
  $region5: #{tile.39} parent=0 // pred_fallthru
    _
  %v4 = vld [vmem:[%s0] ss:$0 sm:$0xff]
  %5 = vst [vmem:[%s1] sm:$0xf] %v4

// kernel: _lambda_.8
$region0: #{_lambda_.8}
  #allocation0 [shape = 'u32[]', space=smem, size = 0x4, offset = 0x4, fixed_abs, tag = 'smem constant byte address 0x4 - core index']
  #allocation1 [shape = 'u32[144,128]{1,0:T(1,128)}', space=vmem, size = 0x12000, scoped, tag = 'internal scratch']
  %s0 = inlined_call_operand.vmem [shape: bf16[8,128], index: 0, kind: input, shape index: {}]
  %s1 = inlined_call_operand.hbm [shape: bf16[128,1024], index: 1, kind: input, shape index: {}]
  %s2 = inlined_call_operand.vmem [shape: f32[8,1024], index: 2, kind: output, shape index: {}]
  %s3 = sld [smem:[#allocation0]]
  $region45: #{_lambda_.8} parent=0
    _
  %s5 = ssub.s32 1, %s3
  %s6 = scalar_select 0, %s5, %s3
  $region1: #{_lambda_.8} parent=0
    #allocation2 [shape = 'u8[262144]{0}', space=vmem, size = 0x40000, scoped, tag = 'input window, operand 1']
    #allocation3 [shape = 's32[2]{0}', space=sflag, size = 0x8, scoped, tag = 'scoped memory for _lambda_.8']
    %7 = vsyncpa [#allocation3], 0
    %s8 = scalar_lea.sflag [#allocation3], 1
    %9 = vsyncpa %s8, 0
    loop: start=0, step=1, limit=4
    $region2: #{_lambda_.8} parent=1 // loop_pre_header
      _
    $region3: #{_lambda_.8} parent=1 // loop_header
      %s11 = sphi 0, %s15
      %p12 = scmp.ge.s32.totalorder %s11, 4
      %s18 = sphi 0, %s30
      %s19 = sphi 0, %s26
      %s20 = sphi 0, %s18
      %s21 = sphi 0, %s19
      %s22 = sphi 0, %s20
      %s23 = sphi 0, %s21
      %s33 = sphi 0, %s35
      %s36 = sphi 0, %s33
      %s37 = sphi 0, %s36
      %s53 = sphi 0, %s37
      %s59 = sphi 0, %s61
      %s62 = sphi 0, %s59
      %s63 = sphi 0, %s62
      %s79 = sphi 0, %s63
      %s87 = sphi 0, %s89
      %s90 = sphi 0, %s87
      %s91 = sphi 0, %s90
      %s107 = sphi 0, %s91
    $region4: #{_lambda_.8} parent=1 // loop_header_branch
      %14 = sbr.rel (%p12) target = $region8
    $region5: #{_lambda_.8} parent=1 // loop_body
      %s16 = ssub.s32 %s11, 1
      %s17 = ssub.s32 %s11, 2
      %s24 = sadd.s32 1, %s19
      %p25 = scmp.ge.s32.totalorder %s24, 2
      %s26 = scalar_select %p25, 0, %s24
      %s27 = sadd.s32 1, %s18
      %s28 = scalar_select %p25, %s27, %s18
      %p29 = scmp.ge.s32.totalorder %s28, 1
      %s30 = scalar_select %p29, 0, %s28
      %s31 = ssub.s32 %s18, %s30
      %p32 = scmp.eq.s32.totalorder %s31, 0
      %s34 = sadd.s32 %s33, 1
      %s35 = scalar_select %p32, %s33, %s34
      %p38 = pneg %p32
      %p39 = scmp.eq.s32.totalorder %s11, 1
      %p40 = por %p38, %p39
      %p41 = scmp.ne.s32.totalorder %s33, %s36
      %p42 = scmp.eq.s32.totalorder %s11, 0
      %p43 = por %p41, %p42
      %p44 = scmp.ne.s32.totalorder %s33, %s36
      %p45 = scmp.eq.s32.totalorder %s16, 1
      %p46 = por %p44, %p45
      %p47 = scmp.ne.s32.totalorder %s36, %s37
      %p48 = scmp.eq.s32.totalorder %s16, 0
      %p49 = por %p47, %p48
      %p50 = scmp.ne.s32.totalorder %s36, %s37
      %p51 = scmp.eq.s32.totalorder %s17, 1
      %p52 = por %p50, %p51
      %p54 = scmp.ne.s32.totalorder %s37, %s53
      %p55 = scmp.eq.s32.totalorder %s17, 0
      %p56 = por %p54, %p55
      %s57 = ssub.s32 %s19, %s26
      %p58 = scmp.eq.s32.totalorder %s57, 0
      %s60 = sadd.s32 %s59, 1
      %s61 = scalar_select %p58, %s59, %s60
      %p64 = pneg %p58
      %p65 = scmp.eq.s32.totalorder %s11, 1
      %p66 = por %p64, %p65
      %p67 = scmp.ne.s32.totalorder %s59, %s62
      %p68 = scmp.eq.s32.totalorder %s11, 0
      %p69 = por %p67, %p68
      %p70 = scmp.ne.s32.totalorder %s59, %s62
      %p71 = scmp.eq.s32.totalorder %s16, 1
      %p72 = por %p70, %p71
      %p73 = scmp.ne.s32.totalorder %s62, %s63
      %p74 = scmp.eq.s32.totalorder %s16, 0
      %p75 = por %p73, %p74
      %p76 = scmp.ne.s32.totalorder %s62, %s63
      %p77 = scmp.eq.s32.totalorder %s17, 1
      %p78 = por %p76, %p77
      %p80 = scmp.ne.s32.totalorder %s63, %s79
      %p81 = scmp.eq.s32.totalorder %s17, 0
      %p82 = por %p80, %p81
      %s83 = ssub.s32 %s18, %s30
      %s84 = ssub.s32 %s19, %s26
      %s85 = sor.u32 %s83, %s84
      %p86 = scmp.eq.s32.totalorder %s85, 0
      %s88 = sadd.s32 %s87, 1
      %s89 = scalar_select %p86, %s87, %s88
      %p92 = pneg %p86
      %p93 = scmp.eq.s32.totalorder %s11, 1
      %p94 = por %p92, %p93
      %p95 = scmp.ne.s32.totalorder %s87, %s90
      %p96 = scmp.eq.s32.totalorder %s11, 0
      %p97 = por %p95, %p96
      %p98 = scmp.ne.s32.totalorder %s87, %s90
      %p99 = scmp.eq.s32.totalorder %s16, 1
      %p100 = por %p98, %p99
      %p101 = scmp.ne.s32.totalorder %s90, %s91
      %p102 = scmp.eq.s32.totalorder %s16, 0
      %p103 = por %p101, %p102
      %p104 = scmp.ne.s32.totalorder %s90, %s91
      %p105 = scmp.eq.s32.totalorder %s17, 1
      %p106 = por %p104, %p105
      %p108 = scmp.ne.s32.totalorder %s91, %s107
      %p109 = scmp.eq.s32.totalorder %s17, 0
      %p110 = por %p108, %p109
      %p111 = scmp.le.s32.totalorder 1, %s11
      %p112 = scmp.lt.s32.totalorder %s11, 3
      %p113 = pnand %p111, %p112
      %p114 = pneg %p113
      // Predicated region
      $region9: #{_lambda_.8} parent=5 // pred_check
        _
      $region10: #{_lambda_.8} parent=5 // pred_check_branch
        %116 = sbr.rel (%p113) target = $region12
      $region11: #{_lambda_.8} parent=5 // pred_region
        %s117 = ssub.s32 %s11, 1
        // Predicated region
        $region13: #{_lambda_.8} parent=11 // pred_check
          %p118 = pneg %p49
        $region14: #{_lambda_.8} parent=11 // pred_check_branch
          %120 = sbr.rel (%p118) target = $region16
        $region15: #{_lambda_.8} parent=11 // pred_region
          %p121 = scmp.lt.s32.totalorder %s20, 0
          %s122 = scalar_select %p121, %s20, 0
          %s123 = smul.addr %s122, 4
          %s124 = scalar_lea.vmem %s0, %s123
        $region16: #{_lambda_.8} parent=11 // pred_fallthru
          _
      $region12: #{_lambda_.8} parent=5 // pred_fallthru
        _
      %p125 = scmp.lt.s32.totalorder %s11, 2
      // Predicated region
      $region17: #{_lambda_.8} parent=5 // pred_check
        %p126 = pneg %p125
      $region18: #{_lambda_.8} parent=5 // pred_check_branch
        %128 = sbr.rel (%p126) target = $region20
      $region19: #{_lambda_.8} parent=5 // pred_region
        // Predicated region
        $region21: #{_lambda_.8} parent=19 // pred_check
          %p129 = pneg %p69
        $region22: #{_lambda_.8} parent=19 // pred_check_branch
          %131 = sbr.rel (%p129) target = $region24
        $region23: #{_lambda_.8} parent=19 // pred_region
          %s132 = sand.u32 %s59, 1
          %s133 = scalar_lea.sflag [#allocation3], %s132
          %s134 = sand.u32 %s59, 1
          %s135 = smul.addr %s134, 256
          %s136 = scalar_lea.vmem [#allocation2], %s135
          %s137 = smul.u32 4, %s19
          %s139 = ssub.s32 4096, 4096
          %140 = vsyncadd %s133, %s139
          %s141 = smul.addr %s137, 64
          %s142 = scalar_lea.hbm %s1, %s141
          %s143 = sshll.u32 %s136, 4
          %s144 = int_to_ptr.vmem [resolvable:$true] %s143
          %149 = dma.hbm_to_vmem [thread:$0]  %s142, 4096, %s144, %s133, 512, 256, 16
        $region24: #{_lambda_.8} parent=19 // pred_fallthru
          _
      $region20: #{_lambda_.8} parent=5 // pred_fallthru
        _
      %p150 = scmp.le.s32.totalorder 1, %s11
      %p151 = scmp.lt.s32.totalorder %s11, 3
      %p152 = pnand %p150, %p151
      %p153 = pneg %p152
      // Predicated region
      $region25: #{_lambda_.8} parent=5 // pred_check
        _
      $region26: #{_lambda_.8} parent=5 // pred_check_branch
        %155 = sbr.rel (%p152) target = $region28
      $region27: #{_lambda_.8} parent=5 // pred_region
        %s156 = ssub.s32 %s11, 1
        %s157 = sand.u32 %s62, 1
        %s158 = scalar_lea.sflag [#allocation3], %s157
        %s159 = sand.u32 %s62, 1
        %s160 = smul.addr %s159, 256
        %s161 = scalar_lea.vmem [#allocation2], %s160
        // Predicated region
        $region29: #{_lambda_.8} parent=27 // pred_check
          %p162 = pneg %p75
        $region30: #{_lambda_.8} parent=27 // pred_check_branch
          %164 = sbr.rel (%p162) target = $region32
        $region31: #{_lambda_.8} parent=27 // pred_region
          %165 = dma.done %s158, 4096
        $region32: #{_lambda_.8} parent=27 // pred_fallthru
          _
        %p166 = scmp.lt.s32.totalorder %s20, 0
        %s167 = scalar_select %p166, %s20, 0
        %s168 = smul.addr %s167, 4
        %s169 = scalar_lea.vmem %s0, %s168
        %p170 = pneg %p49
        %p171 = pneg %p46
        %s172 = sand.u32 %s62, 1
        %s173 = scalar_lea.sflag [#allocation3], %s172
        %s174 = sand.u32 %s62, 1
        %s175 = smul.addr %s174, 256
        %s176 = scalar_lea.vmem [#allocation2], %s175
        %p177 = pneg %p75
        %p178 = pneg %p72
        %p179 = pneg %p103
        %p180 = pneg %p100
        %s181 = smul.u32 4, %s21
        %p182 = scmp.lt.s32.totalorder %s20, 0
        %s183 = scalar_select %p182, %s20, 0
        %p184 = scmp.lt.s32.totalorder %s181, 7
        %s185 = scalar_select %p184, %s181, 7
        %s186 = smul.addr %s183, 8
        %s187 = sadd.s32 %s185, %s186
        %s188 = smul.addr %s187, 8
        %s189 = scalar_lea.vmem %s2, %s188
        %p190 = scmp.lt.s32.totalorder %s20, 0
        %s191 = scalar_select %p190, %s20, 0
        %s192 = smul.addr %s191, 4
        %s193 = scalar_lea.vmem %s0, %s192
        %s194 = smul.u32 4, %s21
        %s195 = smul.u32 4, %s21
        %p196 = scmp.lt.s32.totalorder %s20, 0
        %s197 = scalar_select %p196, %s20, 0
        %p198 = scmp.lt.s32.totalorder %s195, 7
        %s199 = scalar_select %p198, %s195, 7
        %s200 = smul.addr %s197, 8
        %s201 = sadd.s32 %s199, %s200
        %s202 = smul.addr %s201, 8
        %s203 = scalar_lea.vmem %s2, %s202
        %s204 = smul.u32 4, %s21
        %v206 = vld [vmem:[%s193] sm:$0xf]
        %v207 = vld [vmem:[%s161] sm:$0xff]
        %v208 = vld [vmem:[%s161 + $0x8] sm:$0xff]
        %v209 = vld [vmem:[%s161 + $0x10] sm:$0xff]
        %v210 = vld [vmem:[%s161 + $0x18] sm:$0xff]
        %v211 = vld [vmem:[%s161 + $0x20] sm:$0xff]
        %v212 = vld [vmem:[%s161 + $0x28] sm:$0xff]
        %v213 = vld [vmem:[%s161 + $0x30] sm:$0xff]
        %v214 = vld [vmem:[%s161 + $0x38] sm:$0xff]
        %v215 = vld [vmem:[%s161 + $0x40] sm:$0xff]
        %v216 = vld [vmem:[%s161 + $0x48] sm:$0xff]
        %v217 = vld [vmem:[%s161 + $0x50] sm:$0xff]
        %v218 = vld [vmem:[%s161 + $0x58] sm:$0xff]
        %v219 = vld [vmem:[%s161 + $0x60] sm:$0xff]
        %v220 = vld [vmem:[%s161 + $0x68] sm:$0xff]
        %v221 = vld [vmem:[%s161 + $0x70] sm:$0xff]
        %v222 = vld [vmem:[%s161 + $0x78] sm:$0xff]
        %v223 = vld [vmem:[%s161 + $0x80] sm:$0xff]
        %v224 = vld [vmem:[%s161 + $0x88] sm:$0xff]
        %v225 = vld [vmem:[%s161 + $0x90] sm:$0xff]
        %v226 = vld [vmem:[%s161 + $0x98] sm:$0xff]
        %v227 = vld [vmem:[%s161 + $0xa0] sm:$0xff]
        %v228 = vld [vmem:[%s161 + $0xa8] sm:$0xff]
        %v229 = vld [vmem:[%s161 + $0xb0] sm:$0xff]
        %v230 = vld [vmem:[%s161 + $0xb8] sm:$0xff]
        %v231 = vld [vmem:[%s161 + $0xc0] sm:$0xff]
        %v232 = vld [vmem:[%s161 + $0xc8] sm:$0xff]
        %v233 = vld [vmem:[%s161 + $0xd0] sm:$0xff]
        %v234 = vld [vmem:[%s161 + $0xd8] sm:$0xff]
        %v235 = vld [vmem:[%s161 + $0xe0] sm:$0xff]
        %v236 = vld [vmem:[%s161 + $0xe8] sm:$0xff]
        %v237 = vld [vmem:[%s161 + $0xf0] sm:$0xff]
        %v238 = vld [vmem:[%s161 + $0xf8] sm:$0xff]
        %v271 = vunpack.c.l.b16 %v207
        %v272 = vunpack.c.h.b16 %v207
        %v273 = vunpack.c.l.b16 %v208
        %v274 = vunpack.c.h.b16 %v208
        %v275 = vunpack.c.l.b16 %v209
        %v276 = vunpack.c.h.b16 %v209
        %v277 = vunpack.c.l.b16 %v210
        %v278 = vunpack.c.h.b16 %v210
        %v279 = vunpack.c.l.b16 %v211
        %v280 = vunpack.c.h.b16 %v211
        %v281 = vunpack.c.l.b16 %v212
        %v282 = vunpack.c.h.b16 %v212
        %v283 = vunpack.c.l.b16 %v213
        %v284 = vunpack.c.h.b16 %v213
        %v285 = vunpack.c.l.b16 %v214
        %v286 = vunpack.c.h.b16 %v214
        %v287 = vunpack.c.l.b16 %v215
        %v288 = vunpack.c.h.b16 %v215
        %v289 = vunpack.c.l.b16 %v216
        %v290 = vunpack.c.h.b16 %v216
        %v291 = vunpack.c.l.b16 %v217
        %v292 = vunpack.c.h.b16 %v217
        %v293 = vunpack.c.l.b16 %v218
        %v294 = vunpack.c.h.b16 %v218
        %v295 = vunpack.c.l.b16 %v219
        %v296 = vunpack.c.h.b16 %v219
        %v297 = vunpack.c.l.b16 %v220
        %v298 = vunpack.c.h.b16 %v220
        %v299 = vunpack.c.l.b16 %v221
        %v300 = vunpack.c.h.b16 %v221
        %v301 = vunpack.c.l.b16 %v222
        %v302 = vunpack.c.h.b16 %v222
        %v303 = vunpack.c.l.b16 %v223
        %v304 = vunpack.c.h.b16 %v223
        %v305 = vunpack.c.l.b16 %v224
        %v306 = vunpack.c.h.b16 %v224
        %v307 = vunpack.c.l.b16 %v225
        %v308 = vunpack.c.h.b16 %v225
        %v309 = vunpack.c.l.b16 %v226
        %v310 = vunpack.c.h.b16 %v226
        %v311 = vunpack.c.l.b16 %v227
        %v312 = vunpack.c.h.b16 %v227
        %v313 = vunpack.c.l.b16 %v228
        %v314 = vunpack.c.h.b16 %v228
        %v315 = vunpack.c.l.b16 %v229
        %v316 = vunpack.c.h.b16 %v229
        %v317 = vunpack.c.l.b16 %v230
        %v318 = vunpack.c.h.b16 %v230
        %v319 = vunpack.c.l.b16 %v231
        %v320 = vunpack.c.h.b16 %v231
        %v321 = vunpack.c.l.b16 %v232
        %v322 = vunpack.c.h.b16 %v232
        %v323 = vunpack.c.l.b16 %v233
        %v324 = vunpack.c.h.b16 %v233
        %v325 = vunpack.c.l.b16 %v234
        %v326 = vunpack.c.h.b16 %v234
        %v327 = vunpack.c.l.b16 %v235
        %v328 = vunpack.c.h.b16 %v235
        %v329 = vunpack.c.l.b16 %v236
        %v330 = vunpack.c.h.b16 %v236
        %v331 = vunpack.c.l.b16 %v237
        %v332 = vunpack.c.h.b16 %v237
        %v333 = vunpack.c.l.b16 %v238
        %v334 = vunpack.c.h.b16 %v238
        %v335 = vpack.c.b16 %v275, %v271
        %v336 = vpack.c.b16 %v276, %v272
        %v337 = vpack.c.b16 %v277, %v273
        %v338 = vpack.c.b16 %v278, %v274
        %v339 = vpack.c.b16 %v283, %v279
        %v340 = vpack.c.b16 %v284, %v280
        %v341 = vpack.c.b16 %v285, %v281
        %v342 = vpack.c.b16 %v286, %v282
        %v343 = vpack.c.b16 %v291, %v287
        %v344 = vpack.c.b16 %v292, %v288
        %v345 = vpack.c.b16 %v293, %v289
        %v346 = vpack.c.b16 %v294, %v290
        %v347 = vpack.c.b16 %v299, %v295
        %v348 = vpack.c.b16 %v300, %v296
        %v349 = vpack.c.b16 %v301, %v297
        %v350 = vpack.c.b16 %v302, %v298
        %v351 = vpack.c.b16 %v307, %v303
        %v352 = vpack.c.b16 %v308, %v304
        %v353 = vpack.c.b16 %v309, %v305
        %v354 = vpack.c.b16 %v310, %v306
        %v355 = vpack.c.b16 %v315, %v311
        %v356 = vpack.c.b16 %v316, %v312
        %v357 = vpack.c.b16 %v317, %v313
        %v358 = vpack.c.b16 %v318, %v314
        %v359 = vpack.c.b16 %v323, %v319
        %v360 = vpack.c.b16 %v324, %v320
        %v361 = vpack.c.b16 %v325, %v321
        %v362 = vpack.c.b16 %v326, %v322
        %v363 = vpack.c.b16 %v331, %v327
        %v364 = vpack.c.b16 %v332, %v328
        %v365 = vpack.c.b16 %v333, %v329
        %v366 = vpack.c.b16 %v334, %v330
        %399 = vmatprep.subr.bf16.mxu0 %v364
        %400 = vmatpush1.bf16.msra.mxu0 %v363
        %401 = vmatprep.subr.bf16.mxu0 %v360
        %402 = vmatpush1.bf16.msra.mxu0 %v359
        %403 = vmatprep.subr.bf16.mxu0 %v356
        %404 = vmatpush1.bf16.msra.mxu0 %v355
        %405 = vmatprep.subr.bf16.mxu0 %v352
        %406 = vmatpush1.bf16.msra.mxu0 %v351
        %407 = vmatprep.subr.bf16.mxu0 %v348
        %408 = vmatpush1.bf16.msra.mxu0 %v347
        %409 = vmatprep.subr.bf16.mxu0 %v344
        %410 = vmatpush1.bf16.msra.mxu0 %v343
        %411 = vmatprep.subr.bf16.mxu0 %v340
        %412 = vmatpush1.bf16.msra.mxu0 %v339
        %413 = vmatprep.subr.bf16.mxu0 %v336
        %414 = vmatpush1.bf16.msra.mxu0 %v335
        %415 = vmatprep.subr.bf16.mxu0 0
        %416 = vmatpush2.bf16.msra.mxu0 0
        %417 = vmatprep.subr.bf16.mxu0 0
        %418 = vmatpush2.bf16.msra.mxu0 0
        %419 = vmatprep.subr.bf16.mxu0 0
        %420 = vmatpush2.bf16.msra.mxu0 0
        %421 = vmatprep.subr.bf16.mxu0 0
        %422 = vmatpush2.bf16.msra.mxu0 0
        %423 = vmatprep.subr.bf16.mxu0 0
        %424 = vmatpush2.bf16.msra.mxu0 0
        %425 = vmatprep.subr.bf16.mxu0 0
        %426 = vmatpush2.bf16.msra.mxu0 0
        %427 = vmatprep.subr.bf16.mxu0 0
        %428 = vmatpush2.bf16.msra.mxu0 0
        %429 = vmatprep.subr.bf16.mxu0 0
        %430 = vmatpush2.bf16.msra.mxu0 0
        %431 = vmatprep.mubr.bf16.mxu0 0
        %432 = vmatmul.mubr.bf16.gmra.mxu0 %v206
        %v433 = vpop.f32.mrf.mxu0
        %v434 = vadd.f32 0.0, %v433
        %v435 = vpop.f32.mrf.mxu0
        %v436 = vadd.f32 0.0, %v435
        %v437 = vpop.f32.mrf.mxu0
        %v438 = vpop.f32.mrf.mxu0
        %439 = vdwg.mxu0
        %440 = vmatprep.subr.bf16.mxu0 %v366
        %441 = vmatpush1.bf16.msra.mxu0 %v365
        %442 = vmatprep.subr.bf16.mxu0 %v362
        %443 = vmatpush1.bf16.msra.mxu0 %v361
        %444 = vmatprep.subr.bf16.mxu0 %v358
        %445 = vmatpush1.bf16.msra.mxu0 %v357
        %446 = vmatprep.subr.bf16.mxu0 %v354
        %447 = vmatpush1.bf16.msra.mxu0 %v353
        %448 = vmatprep.subr.bf16.mxu0 %v350
        %449 = vmatpush1.bf16.msra.mxu0 %v349
        %450 = vmatprep.subr.bf16.mxu0 %v346
        %451 = vmatpush1.bf16.msra.mxu0 %v345
        %452 = vmatprep.subr.bf16.mxu0 %v342
        %453 = vmatpush1.bf16.msra.mxu0 %v341
        %454 = vmatprep.subr.bf16.mxu0 %v338
        %455 = vmatpush1.bf16.msra.mxu0 %v337
        %456 = vmatprep.subr.bf16.mxu0 0
        %457 = vmatpush2.bf16.msra.mxu0 0
        %458 = vmatprep.subr.bf16.mxu0 0
        %459 = vmatpush2.bf16.msra.mxu0 0
        %460 = vmatprep.subr.bf16.mxu0 0
        %461 = vmatpush2.bf16.msra.mxu0 0
        %462 = vmatprep.subr.bf16.mxu0 0
        %463 = vmatpush2.bf16.msra.mxu0 0
        %464 = vmatprep.subr.bf16.mxu0 0
        %465 = vmatpush2.bf16.msra.mxu0 0
        %466 = vmatprep.subr.bf16.mxu0 0
        %467 = vmatpush2.bf16.msra.mxu0 0
        %468 = vmatprep.subr.bf16.mxu0 0
        %469 = vmatpush2.bf16.msra.mxu0 0
        %470 = vmatprep.subr.bf16.mxu0 0
        %471 = vmatpush2.bf16.msra.mxu0 0
        %472 = vmatprep.mubr.bf16.mxu0 0
        %473 = vmatmul.mubr.bf16.gmra.mxu0 %v206
        %v474 = vpop.f32.mrf.mxu0
        %v475 = vadd.f32 0.0, %v474
        %v476 = vpop.f32.mrf.mxu0
        %v477 = vadd.f32 0.0, %v476
        %v478 = vpop.f32.mrf.mxu0
        %v479 = vpop.f32.mrf.mxu0
        %480 = vdwg.mxu0
        %481 = vst [vmem:[%s203] sm:$0xff] %v434
        %482 = vst [vmem:[%s203 + $0x8] sm:$0xff] %v436
        %483 = vst [vmem:[%s203 + $0x10] sm:$0xff] %v475
        %484 = vst [vmem:[%s203 + $0x18] sm:$0xff] %v477
        %s485 = smul.u32 4, %s21
        %p486 = scmp.lt.s32.totalorder %s20, 0
        %s487 = scalar_select %p486, %s20, 0
        %p488 = scmp.lt.s32.totalorder %s485, 7
        %s489 = scalar_select %p488, %s485, 7
        %s490 = smul.addr %s487, 8
        %s491 = sadd.s32 %s489, %s490
        %s492 = smul.addr %s491, 8
        %s493 = scalar_lea.vmem %s2, %s492
        // Predicated region
        $region33: #{_lambda_.8} parent=27 // pred_check
          %p494 = pneg %p100
        $region34: #{_lambda_.8} parent=27 // pred_check_branch
          %496 = sbr.rel (%p494) target = $region36
        $region35: #{_lambda_.8} parent=27 // pred_region
          %s497 = smul.u32 4, %s21
        $region36: #{_lambda_.8} parent=27 // pred_fallthru
          _
      $region28: #{_lambda_.8} parent=5 // pred_fallthru
        _
      %p498 = scmp.le.s32.totalorder 2, %s11
      // Predicated region
      $region37: #{_lambda_.8} parent=5 // pred_check
        %p499 = pneg %p498
      $region38: #{_lambda_.8} parent=5 // pred_check_branch
        %501 = sbr.rel (%p499) target = $region40
      $region39: #{_lambda_.8} parent=5 // pred_region
        %s502 = ssub.s32 %s11, 2
        // Predicated region
        $region41: #{_lambda_.8} parent=39 // pred_check
          %p503 = pneg %p106
        $region42: #{_lambda_.8} parent=39 // pred_check_branch
          %505 = sbr.rel (%p503) target = $region44
        $region43: #{_lambda_.8} parent=39 // pred_region
          %s506 = smul.u32 4, %s23
          %p507 = scmp.lt.s32.totalorder %s22, 0
          %s508 = scalar_select %p507, %s22, 0
          %p509 = scmp.lt.s32.totalorder %s506, 7
          %s510 = scalar_select %p509, %s506, 7
          %s511 = smul.addr %s508, 8
          %s512 = sadd.s32 %s510, %s511
          %s513 = smul.addr %s512, 8
          %s514 = scalar_lea.vmem %s2, %s513
        $region44: #{_lambda_.8} parent=39 // pred_fallthru
          _
      $region40: #{_lambda_.8} parent=5 // pred_fallthru
        _
    $region6: #{_lambda_.8} parent=1 // loop_footer
      %s15 = sadd.s32 1, %s11
    $region7: #{_lambda_.8} parent=1 // loop_footer_branch
      %10 = sbr.rel target = $region3
    $region8: #{_lambda_.8} parent=1 // loop_exit
      _
    %515 = vsyncpa [#allocation3], 1
    %s516 = scalar_lea.sflag [#allocation3], 1
    %517 = vsyncpa %s516, 1

// kernel: _lambda_.9
$region0: #{_lambda_.9}
  #allocation0 [shape = 'u32[]', space=smem, size = 0x4, offset = 0x4, fixed_abs, tag = 'smem constant byte address 0x4 - core index']
  #allocation1 [shape = 'u32[144,128]{1,0:T(1,128)}', space=vmem, size = 0x12000, scoped, tag = 'internal scratch']
  %s0 = inlined_call_operand.vmem [shape: f32[8,256], index: 0, kind: input, shape index: {}]
  %s1 = inlined_call_operand.vmem [shape: f32[1,256], index: 1, kind: input, shape index: {}]
  %s2 = inlined_call_operand.vmem [shape: f32[1,256], index: 2, kind: input, shape index: {}]
  %s3 = inlined_call_operand.vmem [shape: f32[8,256], index: 3, kind: output, shape index: {}]
  %s4 = sld [smem:[#allocation0]]
  $region22: #{_lambda_.9} parent=0
    _
  %s6 = ssub.s32 1, %s4
  %s7 = scalar_select 0, %s6, %s4
  // Predicated region
  $region2: #{_lambda_.9} parent=0 // pred_check
    _
  $region3: #{_lambda_.9} parent=0 // pred_check_branch
    %9 = sbr.rel (0) target = $region5
  $region4: #{_lambda_.9} parent=0 // pred_region
    _
  $region5: #{_lambda_.9} parent=0 // pred_fallthru
    _
  // Predicated region
  $region6: #{_lambda_.9} parent=0 // pred_check
    _
  $region7: #{_lambda_.9} parent=0 // pred_check_branch
    %11 = sbr.rel (0) target = $region9
  $region8: #{_lambda_.9} parent=0 // pred_region
    _
  $region9: #{_lambda_.9} parent=0 // pred_fallthru
    _
  // Predicated region
  $region10: #{_lambda_.9} parent=0 // pred_check
    _
  $region11: #{_lambda_.9} parent=0 // pred_check_branch
    %13 = sbr.rel (0) target = $region13
  $region12: #{_lambda_.9} parent=0 // pred_region
    _
  $region13: #{_lambda_.9} parent=0 // pred_fallthru
    _
  %v14 = vld [vmem:[%s0] sm:$0xff]
  %v15 = vld [vmem:[%s0 + $0x8] sm:$0xff]
  %v16 = vld [vmem:[%s1] sm:$0x3]
  %v18 = vlaneseq
  %v19 = vshrl.u32 %v18, 7
  %v20 = vsub.s32 0, %v19
  %v21 = vrot.slane %v16, %v20
  %v22 = vlaneseq
  %v23 = vshrl.u32 %v22, 7
  %v24 = vsub.s32 1, %v23
  %v25 = vrot.slane %v16, %v24
  %v28 = vmul.f32 %v14, %v21
  %v29 = vmul.f32 %v15, %v25
  %v30 = vld [vmem:[%s2] sm:$0x3]
  %v32 = vlaneseq
  %v33 = vshrl.u32 %v32, 7
  %v34 = vsub.s32 0, %v33
  %v35 = vrot.slane %v30, %v34
  %v36 = vlaneseq
  %v37 = vshrl.u32 %v36, 7
  %v38 = vsub.s32 1, %v37
  %v39 = vrot.slane %v30, %v38
  %v42 = vadd.f32 %v28, %v35
  %v43 = vadd.f32 %v29, %v39
  %v44 = vmax.f32 %v42, 0.0
  %v45 = vmax.f32 %v43, 0.0
  %46 = vst [vmem:[%s3] sm:$0xff] %v44
  %47 = vst [vmem:[%s3 + $0x8] sm:$0xff] %v45
  // Predicated region
  $region14: #{_lambda_.9} parent=0 // pred_check
    _
  $region15: #{_lambda_.9} parent=0 // pred_check_branch
    %49 = sbr.rel (0) target = $region17
  $region16: #{_lambda_.9} parent=0 // pred_region
    _
  $region17: #{_lambda_.9} parent=0 // pred_fallthru
    _
  // Predicated region
  $region18: #{_lambda_.9} parent=0 // pred_check
    _
  $region19: #{_lambda_.9} parent=0 // pred_check_branch
    %51 = sbr.rel (0) target = $region21
  $region20: #{_lambda_.9} parent=0 // pred_region
    _
  $region21: #{_lambda_.9} parent=0 // pred_fallthru
    _

// kernel: _lambda_.10
$region0: #{_lambda_.10}
  #allocation0 [shape = 'u32[]', space=smem, size = 0x4, offset = 0x4, fixed_abs, tag = 'smem constant byte address 0x4 - core index']
  #allocation1 [shape = 'u32[144,128]{1,0:T(1,128)}', space=vmem, size = 0x12000, scoped, tag = 'internal scratch']
  %s0 = inlined_call_operand.vmem [shape: bf16[32,128], index: 0, kind: input, shape index: {}]
  %s1 = inlined_call_operand.hbm [shape: bf16[128,768], index: 1, kind: input, shape index: {}]
  %s2 = inlined_call_operand.vmem [shape: f32[32,768], index: 2, kind: output, shape index: {}]
  %s3 = sld [smem:[#allocation0]]
  $region64: #{_lambda_.10} parent=0
    _
  %s5 = ssub.s32 1, %s3
  %s6 = scalar_select 0, %s5, %s3
  $region1: #{_lambda_.10} parent=0
    #allocation2 [shape = 'u8[131072]{0}', space=vmem, size = 0x20000, scoped, tag = 'input window, operand 1']
    #allocation3 [shape = 's32[2]{0}', space=sflag, size = 0x8, scoped, tag = 'scoped memory for _lambda_.10']
    #allocation4 [shape = 'u8[65536]{0}', space=vmem, size = 0x10000, scoped, tag = 'output window, operand 0']
    %7 = vsyncpa [#allocation3], 0
    %s8 = scalar_lea.sflag [#allocation3], 1
    %9 = vsyncpa %s8, 0
    loop: start=0, step=1, limit=5
    $region2: #{_lambda_.10} parent=1 // loop_pre_header
      _
    $region3: #{_lambda_.10} parent=1 // loop_header
      %s11 = sphi 0, %s15
      %p12 = scmp.ge.s32.totalorder %s11, 5
      %s18 = sphi 0, %s30
      %s19 = sphi 0, %s26
      %s20 = sphi 0, %s18
      %s21 = sphi 0, %s19
      %s22 = sphi 0, %s20
      %s23 = sphi 0, %s21
      %s33 = sphi 0, %s35
      %s36 = sphi 0, %s33
      %s37 = sphi 0, %s36
      %s53 = sphi 0, %s37
      %s59 = sphi 0, %s61
      %s62 = sphi 0, %s59
      %s63 = sphi 0, %s62
      %s79 = sphi 0, %s63
      %s87 = sphi 0, %s89
      %s90 = sphi 0, %s87
      %s91 = sphi 0, %s90
      %s107 = sphi 0, %s91
    $region4: #{_lambda_.10} parent=1 // loop_header_branch
      %14 = sbr.rel (%p12) target = $region8
    $region5: #{_lambda_.10} parent=1 // loop_body
      %s16 = ssub.s32 %s11, 1
      %s17 = ssub.s32 %s11, 2
      %s24 = sadd.s32 1, %s19
      %p25 = scmp.ge.s32.totalorder %s24, 3
      %s26 = scalar_select %p25, 0, %s24
      %s27 = sadd.s32 1, %s18
      %s28 = scalar_select %p25, %s27, %s18
      %p29 = scmp.ge.s32.totalorder %s28, 1
      %s30 = scalar_select %p29, 0, %s28
      %s31 = ssub.s32 %s18, %s30
      %p32 = scmp.eq.s32.totalorder %s31, 0
      %s34 = sadd.s32 %s33, 1
      %s35 = scalar_select %p32, %s33, %s34
      %p38 = pneg %p32
      %p39 = scmp.eq.s32.totalorder %s11, 2
      %p40 = por %p38, %p39
      %p41 = scmp.ne.s32.totalorder %s33, %s36
      %p42 = scmp.eq.s32.totalorder %s11, 0
      %p43 = por %p41, %p42
      %p44 = scmp.ne.s32.totalorder %s33, %s36
      %p45 = scmp.eq.s32.totalorder %s16, 2
      %p46 = por %p44, %p45
      %p47 = scmp.ne.s32.totalorder %s36, %s37
      %p48 = scmp.eq.s32.totalorder %s16, 0
      %p49 = por %p47, %p48
      %p50 = scmp.ne.s32.totalorder %s36, %s37
      %p51 = scmp.eq.s32.totalorder %s17, 2
      %p52 = por %p50, %p51
      %p54 = scmp.ne.s32.totalorder %s37, %s53
      %p55 = scmp.eq.s32.totalorder %s17, 0
      %p56 = por %p54, %p55
      %s57 = ssub.s32 %s19, %s26
      %p58 = scmp.eq.s32.totalorder %s57, 0
      %s60 = sadd.s32 %s59, 1
      %s61 = scalar_select %p58, %s59, %s60
      %p64 = pneg %p58
      %p65 = scmp.eq.s32.totalorder %s11, 2
      %p66 = por %p64, %p65
      %p67 = scmp.ne.s32.totalorder %s59, %s62
      %p68 = scmp.eq.s32.totalorder %s11, 0
      %p69 = por %p67, %p68
      %p70 = scmp.ne.s32.totalorder %s59, %s62
      %p71 = scmp.eq.s32.totalorder %s16, 2
      %p72 = por %p70, %p71
      %p73 = scmp.ne.s32.totalorder %s62, %s63
      %p74 = scmp.eq.s32.totalorder %s16, 0
      %p75 = por %p73, %p74
      %p76 = scmp.ne.s32.totalorder %s62, %s63
      %p77 = scmp.eq.s32.totalorder %s17, 2
      %p78 = por %p76, %p77
      %p80 = scmp.ne.s32.totalorder %s63, %s79
      %p81 = scmp.eq.s32.totalorder %s17, 0
      %p82 = por %p80, %p81
      %s83 = ssub.s32 %s18, %s30
      %s84 = ssub.s32 %s19, %s26
      %s85 = sor.u32 %s83, %s84
      %p86 = scmp.eq.s32.totalorder %s85, 0
      %s88 = sadd.s32 %s87, 1
      %s89 = scalar_select %p86, %s87, %s88
      %p92 = pneg %p86
      %p93 = scmp.eq.s32.totalorder %s11, 2
      %p94 = por %p92, %p93
      %p95 = scmp.ne.s32.totalorder %s87, %s90
      %p96 = scmp.eq.s32.totalorder %s11, 0
      %p97 = por %p95, %p96
      %p98 = scmp.ne.s32.totalorder %s87, %s90
      %p99 = scmp.eq.s32.totalorder %s16, 2
      %p100 = por %p98, %p99
      %p101 = scmp.ne.s32.totalorder %s90, %s91
      %p102 = scmp.eq.s32.totalorder %s16, 0
      %p103 = por %p101, %p102
      %p104 = scmp.ne.s32.totalorder %s90, %s91
      %p105 = scmp.eq.s32.totalorder %s17, 2
      %p106 = por %p104, %p105
      %p108 = scmp.ne.s32.totalorder %s91, %s107
      %p109 = scmp.eq.s32.totalorder %s17, 0
      %p110 = por %p108, %p109
      %p111 = scmp.le.s32.totalorder 1, %s11
      %p112 = scmp.lt.s32.totalorder %s11, 4
      %p113 = pnand %p111, %p112
      %p114 = pneg %p113
      // Predicated region
      $region9: #{_lambda_.10} parent=5 // pred_check
        _
      $region10: #{_lambda_.10} parent=5 // pred_check_branch
        %116 = sbr.rel (%p113) target = $region12
      $region11: #{_lambda_.10} parent=5 // pred_region
        %s117 = ssub.s32 %s11, 1
        // Predicated region
        $region13: #{_lambda_.10} parent=11 // pred_check
          %p118 = pneg %p49
        $region14: #{_lambda_.10} parent=11 // pred_check_branch
          %120 = sbr.rel (%p118) target = $region16
        $region15: #{_lambda_.10} parent=11 // pred_region
          %s121 = smul.u32 4, %s20
          %p122 = scmp.lt.s32.totalorder %s121, 3
          %s123 = scalar_select %p122, %s121, 3
          %s124 = smul.addr %s123, 4
          %s125 = scalar_lea.vmem %s0, %s124
          %s126 = smul.u32 4, %s20
        $region16: #{_lambda_.10} parent=11 // pred_fallthru
          _
      $region12: #{_lambda_.10} parent=5 // pred_fallthru
        _
      %p127 = scmp.lt.s32.totalorder %s11, 3
      // Predicated region
      $region17: #{_lambda_.10} parent=5 // pred_check
        %p128 = pneg %p127
      $region18: #{_lambda_.10} parent=5 // pred_check_branch
        %130 = sbr.rel (%p128) target = $region20
      $region19: #{_lambda_.10} parent=5 // pred_region
        // Predicated region
        $region21: #{_lambda_.10} parent=19 // pred_check
          %p131 = pneg %p69
        $region22: #{_lambda_.10} parent=19 // pred_check_branch
          %133 = sbr.rel (%p131) target = $region24
        $region23: #{_lambda_.10} parent=19 // pred_region
          %s134 = sand.u32 %s59, 1
          %s135 = scalar_lea.sflag [#allocation3], %s134
          %s136 = sand.u32 %s59, 1
          %s137 = smul.addr %s136, 128
          %s138 = scalar_lea.vmem [#allocation2], %s137
          %s139 = smul.u32 2, %s19
          %s141 = ssub.s32 2048, 2048
          %142 = vsyncadd %s135, %s141
          %s143 = smul.addr %s139, 64
          %s144 = scalar_lea.hbm %s1, %s143
          %s145 = sshll.u32 %s138, 4
          %s146 = int_to_ptr.vmem [resolvable:$true] %s145
          %151 = dma.hbm_to_vmem [thread:$0]  %s144, 2048, %s146, %s135, 384, 128, 8
        $region24: #{_lambda_.10} parent=19 // pred_fallthru
          _
      $region20: #{_lambda_.10} parent=5 // pred_fallthru
        _
      %p152 = scmp.le.s32.totalorder 1, %s11
      %p153 = scmp.lt.s32.totalorder %s11, 4
      %p154 = pnand %p152, %p153
      %p155 = pneg %p154
      // Predicated region
      $region25: #{_lambda_.10} parent=5 // pred_check
        _
      $region26: #{_lambda_.10} parent=5 // pred_check_branch
        %157 = sbr.rel (%p154) target = $region28
      $region27: #{_lambda_.10} parent=5 // pred_region
        %s158 = ssub.s32 %s11, 1
        %s159 = sand.u32 %s62, 1
        %s160 = scalar_lea.sflag [#allocation3], %s159
        %s161 = sand.u32 %s62, 1
        %s162 = smul.addr %s161, 128
        %s163 = scalar_lea.vmem [#allocation2], %s162
        // Predicated region
        $region29: #{_lambda_.10} parent=27 // pred_check
          %p164 = pneg %p75
        $region30: #{_lambda_.10} parent=27 // pred_check_branch
          %166 = sbr.rel (%p164) target = $region32
        $region31: #{_lambda_.10} parent=27 // pred_region
          %167 = dma.done %s160, 2048
        $region32: #{_lambda_.10} parent=27 // pred_fallthru
          _
        %s168 = smul.u32 4, %s20
        %p169 = scmp.lt.s32.totalorder %s168, 3
        %s170 = scalar_select %p169, %s168, 3
        %s171 = smul.addr %s170, 4
        %s172 = scalar_lea.vmem %s0, %s171
        %p173 = pneg %p49
        %p174 = pneg %p46
        %s175 = sand.u32 %s62, 1
        %s176 = scalar_lea.sflag [#allocation3], %s175
        %s177 = sand.u32 %s62, 1
        %s178 = smul.addr %s177, 128
        %s179 = scalar_lea.vmem [#allocation2], %s178
        %p180 = pneg %p75
        %p181 = pneg %p72
        %p182 = pneg %p103
        %p183 = pneg %p100
        %s184 = sand.u32 %s90, 1
        %s185 = sand.u32 %s90, 1
        %s186 = smul.addr %s185, 64
        %s187 = scalar_lea.vmem [#allocation4], %s186
        %s188 = smul.u32 4, %s20
        %p189 = scmp.lt.s32.totalorder %s188, 3
        %s190 = scalar_select %p189, %s188, 3
        %s191 = smul.addr %s190, 4
        %s192 = scalar_lea.vmem %s0, %s191
        %s193 = smul.u32 4, %s20
        %s194 = smul.u32 2, %s21
        %s195 = smul.u32 4, %s20
        %s196 = smul.u32 2, %s21
        %v198 = vld [vmem:[%s192] sm:$0xf]
        %v199 = vld [vmem:[%s192 + $0x4] sm:$0xf]
        %v200 = vld [vmem:[%s192 + $0x8] sm:$0xf]
        %v201 = vld [vmem:[%s192 + $0xc] sm:$0xf]
        %v202 = vld [vmem:[%s163] sm:$0xff]
        %v203 = vld [vmem:[%s163 + $0x8] sm:$0xff]
        %v204 = vld [vmem:[%s163 + $0x10] sm:$0xff]
        %v205 = vld [vmem:[%s163 + $0x18] sm:$0xff]
        %v206 = vld [vmem:[%s163 + $0x20] sm:$0xff]
        %v207 = vld [vmem:[%s163 + $0x28] sm:$0xff]
        %v208 = vld [vmem:[%s163 + $0x30] sm:$0xff]
        %v209 = vld [vmem:[%s163 + $0x38] sm:$0xff]
        %v210 = vld [vmem:[%s163 + $0x40] sm:$0xff]
        %v211 = vld [vmem:[%s163 + $0x48] sm:$0xff]
        %v212 = vld [vmem:[%s163 + $0x50] sm:$0xff]
        %v213 = vld [vmem:[%s163 + $0x58] sm:$0xff]
        %v214 = vld [vmem:[%s163 + $0x60] sm:$0xff]
        %v215 = vld [vmem:[%s163 + $0x68] sm:$0xff]
        %v216 = vld [vmem:[%s163 + $0x70] sm:$0xff]
        %v217 = vld [vmem:[%s163 + $0x78] sm:$0xff]
        %v222 = vunpack.c.l.b16 %v198
        %v223 = vunpack.c.l.b16 %v199
        %v224 = vunpack.c.l.b16 %v200
        %v225 = vunpack.c.l.b16 %v201
        %v226 = vpack.c.b16 %v223, %v222
        %v227 = vpack.c.b16 %v225, %v224
        %v246 = vunpack.c.l.b16 %v202
        %v247 = vunpack.c.h.b16 %v202
        %v248 = vunpack.c.l.b16 %v203
        %v249 = vunpack.c.h.b16 %v203
        %v250 = vunpack.c.l.b16 %v204
        %v251 = vunpack.c.h.b16 %v204
        %v252 = vunpack.c.l.b16 %v205
        %v253 = vunpack.c.h.b16 %v205
        %v254 = vunpack.c.l.b16 %v206
        %v255 = vunpack.c.h.b16 %v206
        %v256 = vunpack.c.l.b16 %v207
        %v257 = vunpack.c.h.b16 %v207
        %v258 = vunpack.c.l.b16 %v208
        %v259 = vunpack.c.h.b16 %v208
        %v260 = vunpack.c.l.b16 %v209
        %v261 = vunpack.c.h.b16 %v209
        %v262 = vunpack.c.l.b16 %v210
        %v263 = vunpack.c.h.b16 %v210
        %v264 = vunpack.c.l.b16 %v211
        %v265 = vunpack.c.h.b16 %v211
        %v266 = vunpack.c.l.b16 %v212
        %v267 = vunpack.c.h.b16 %v212
        %v268 = vunpack.c.l.b16 %v213
        %v269 = vunpack.c.h.b16 %v213
        %v270 = vunpack.c.l.b16 %v214
        %v271 = vunpack.c.h.b16 %v214
        %v272 = vunpack.c.l.b16 %v215
        %v273 = vunpack.c.h.b16 %v215
        %v274 = vunpack.c.l.b16 %v216
        %v275 = vunpack.c.h.b16 %v216
        %v276 = vunpack.c.l.b16 %v217
        %v277 = vunpack.c.h.b16 %v217
        %v278 = vpack.c.b16 %v248, %v246
        %v279 = vpack.c.b16 %v249, %v247
        %v280 = vpack.c.b16 %v252, %v250
        %v281 = vpack.c.b16 %v253, %v251
        %v282 = vpack.c.b16 %v256, %v254
        %v283 = vpack.c.b16 %v257, %v255
        %v284 = vpack.c.b16 %v260, %v258
        %v285 = vpack.c.b16 %v261, %v259
        %v286 = vpack.c.b16 %v264, %v262
        %v287 = vpack.c.b16 %v265, %v263
        %v288 = vpack.c.b16 %v268, %v266
        %v289 = vpack.c.b16 %v269, %v267
        %v290 = vpack.c.b16 %v272, %v270
        %v291 = vpack.c.b16 %v273, %v271
        %v292 = vpack.c.b16 %v276, %v274
        %v293 = vpack.c.b16 %v277, %v275
        %310 = vmatprep.subr.bf16.mxu0 %v293
        %311 = vmatpush1.bf16.msra.mxu0 %v292
        %312 = vmatprep.subr.bf16.mxu0 %v291
        %313 = vmatpush1.bf16.msra.mxu0 %v290
        %314 = vmatprep.subr.bf16.mxu0 %v289
        %315 = vmatpush1.bf16.msra.mxu0 %v288
        %316 = vmatprep.subr.bf16.mxu0 %v287
        %317 = vmatpush1.bf16.msra.mxu0 %v286
        %318 = vmatprep.subr.bf16.mxu0 %v285
        %319 = vmatpush1.bf16.msra.mxu0 %v284
        %320 = vmatprep.subr.bf16.mxu0 %v283
        %321 = vmatpush1.bf16.msra.mxu0 %v282
        %322 = vmatprep.subr.bf16.mxu0 %v281
        %323 = vmatpush1.bf16.msra.mxu0 %v280
        %324 = vmatprep.subr.bf16.mxu0 %v279
        %325 = vmatpush1.bf16.msra.mxu0 %v278
        %326 = vmatprep.subr.bf16.mxu0 0
        %327 = vmatpush2.bf16.msra.mxu0 0
        %328 = vmatprep.subr.bf16.mxu0 0
        %329 = vmatpush2.bf16.msra.mxu0 0
        %330 = vmatprep.subr.bf16.mxu0 0
        %331 = vmatpush2.bf16.msra.mxu0 0
        %332 = vmatprep.subr.bf16.mxu0 0
        %333 = vmatpush2.bf16.msra.mxu0 0
        %334 = vmatprep.subr.bf16.mxu0 0
        %335 = vmatpush2.bf16.msra.mxu0 0
        %336 = vmatprep.subr.bf16.mxu0 0
        %337 = vmatpush2.bf16.msra.mxu0 0
        %338 = vmatprep.subr.bf16.mxu0 0
        %339 = vmatpush2.bf16.msra.mxu0 0
        %340 = vmatprep.subr.bf16.mxu0 0
        %341 = vmatpush2.bf16.msra.mxu0 0
        %342 = vmatprep.mubr.bf16.mxu0 0
        %343 = vmatmul.mubr.bf16.gmra.mxu0 %v226
        %v344 = vpop.f32.mrf.mxu0
        %v345 = vadd.f32 0.0, %v344
        %v346 = vpop.f32.mrf.mxu0
        %v347 = vadd.f32 0.0, %v346
        %v348 = vpop.f32.mrf.mxu0
        %v349 = vadd.f32 0.0, %v348
        %v350 = vpop.f32.mrf.mxu0
        %v351 = vadd.f32 0.0, %v350
        %352 = vmatprep.mubr.bf16.mxu0 0
        %353 = vmatmul.mubr.bf16.gmra.mxu0 %v227
        %v354 = vpop.f32.mrf.mxu0
        %v355 = vadd.f32 0.0, %v354
        %v356 = vpop.f32.mrf.mxu0
        %v357 = vadd.f32 0.0, %v356
        %v358 = vpop.f32.mrf.mxu0
        %v359 = vadd.f32 0.0, %v358
        %v360 = vpop.f32.mrf.mxu0
        %v361 = vadd.f32 0.0, %v360
        %362 = vdwg.mxu0
        %363 = vst [vmem:[%s187] sm:$0xff] %v345
        %364 = vst [vmem:[%s187 + $0x8] sm:$0xff] %v347
        %365 = vst [vmem:[%s187 + $0x10] sm:$0xff] %v349
        %366 = vst [vmem:[%s187 + $0x18] sm:$0xff] %v351
        %367 = vst [vmem:[%s187 + $0x20] sm:$0xff] %v355
        %368 = vst [vmem:[%s187 + $0x28] sm:$0xff] %v357
        %369 = vst [vmem:[%s187 + $0x30] sm:$0xff] %v359
        %370 = vst [vmem:[%s187 + $0x38] sm:$0xff] %v361
        %s371 = sand.u32 %s90, 1
        %s372 = sand.u32 %s90, 1
        %s373 = smul.addr %s372, 64
        %s374 = scalar_lea.vmem [#allocation4], %s373
        // Predicated region
        $region33: #{_lambda_.10} parent=27 // pred_check
          %p375 = pneg %p100
        $region34: #{_lambda_.10} parent=27 // pred_check_branch
          %377 = sbr.rel (%p375) target = $region36
        $region35: #{_lambda_.10} parent=27 // pred_region
          %s378 = smul.u32 4, %s20
          %s379 = smul.u32 2, %s21
          %s380 = smul.addr %s378, 6
          %s381 = sadd.s32 %s379, %s380
          %s382 = smul.addr %s381, 8
          %s383 = scalar_lea.vmem %s2, %s382
          // Predicated region
          $region37: #{_lambda_.10} parent=35 // pred_check
            _
          $region38: #{_lambda_.10} parent=35 // pred_check_branch
            %385 = sbr.rel (0) target = $region40
          $region39: #{_lambda_.10} parent=35 // pred_region
            // Predicated region
            $region41: #{_lambda_.10} parent=39 // pred_check
              _
            $region42: #{_lambda_.10} parent=39 // pred_check_branch
              %387 = sbr.rel (0) target = $region44
            $region43: #{_lambda_.10} parent=39 // pred_region
              loop: start=0, step=1, limit=1
              $region45: #{_lambda_.10} parent=43 // loop_pre_header
                _
              $region46: #{_lambda_.10} parent=43 // loop_header
                %s389 = sphi 0, %s393
                %p390 = scmp.ge.s32.totalorder %s389, 1
                %s394 = sphi %s374, %s374
                %s395 = sphi %s383, %s383
              $region47: #{_lambda_.10} parent=43 // loop_header_branch
                %392 = sbr.rel (%p390) target = $region51
              $region48: #{_lambda_.10} parent=43 // loop_body
                %v396 = vld [vmem:[%s394] sm:$0xff]
                %397 = vst [vmem:[%s395] sm:$0xff] %v396
                %v398 = vld [vmem:[%s394 + $0x8] sm:$0xff]
                %399 = vst [vmem:[%s395 + $0x8] sm:$0xff] %v398
                %v400 = vld [vmem:[%s394 + $0x10] sm:$0xff]
                %401 = vst [vmem:[%s395 + $0x30] sm:$0xff] %v400
                %v402 = vld [vmem:[%s394 + $0x18] sm:$0xff]
                %403 = vst [vmem:[%s395 + $0x38] sm:$0xff] %v402
                %v404 = vld [vmem:[%s394 + $0x20] sm:$0xff]
                %405 = vst [vmem:[%s395 + $0x60] sm:$0xff] %v404
                %v406 = vld [vmem:[%s394 + $0x28] sm:$0xff]
                %407 = vst [vmem:[%s395 + $0x68] sm:$0xff] %v406
                %v408 = vld [vmem:[%s394 + $0x30] sm:$0xff]
                %409 = vst [vmem:[%s395 + $0x90] sm:$0xff] %v408
                %v410 = vld [vmem:[%s394 + $0x38] sm:$0xff]
                %411 = vst [vmem:[%s395 + $0x98] sm:$0xff] %v410
              $region49: #{_lambda_.10} parent=43 // loop_footer
                %s393 = sadd.s32 1, %s389
              $region50: #{_lambda_.10} parent=43 // loop_footer_branch
                %388 = sbr.rel target = $region46
              $region51: #{_lambda_.10} parent=43 // loop_exit
                _
            $region44: #{_lambda_.10} parent=39 // pred_fallthru
              _
            // Predicated region
            $region52: #{_lambda_.10} parent=39 // pred_check
              _
            $region53: #{_lambda_.10} parent=39 // pred_check_branch
              %413 = sbr.rel target = $region55
            $region54: #{_lambda_.10} parent=39 // pred_region
              _
            $region55: #{_lambda_.10} parent=39 // pred_fallthru
              _
          $region40: #{_lambda_.10} parent=35 // pred_fallthru
            _
          %414 = vnop
        $region36: #{_lambda_.10} parent=27 // pred_fallthru
          _
      $region28: #{_lambda_.10} parent=5 // pred_fallthru
        _
      %p415 = scmp.le.s32.totalorder 2, %s11
      // Predicated region
      $region56: #{_lambda_.10} parent=5 // pred_check
        %p416 = pneg %p415
      $region57: #{_lambda_.10} parent=5 // pred_check_branch
        %418 = sbr.rel (%p416) target = $region59
      $region58: #{_lambda_.10} parent=5 // pred_region
        %s419 = ssub.s32 %s11, 2
        // Predicated region
        $region60: #{_lambda_.10} parent=58 // pred_check
          %p420 = pneg %p106
        $region61: #{_lambda_.10} parent=58 // pred_check_branch
          %422 = sbr.rel (%p420) target = $region63
        $region62: #{_lambda_.10} parent=58 // pred_region
          %s423 = sand.u32 %s91, 1
          %s424 = sand.u32 %s91, 1
          %s425 = smul.addr %s424, 64
          %s426 = scalar_lea.vmem [#allocation4], %s425
        $region63: #{_lambda_.10} parent=58 // pred_fallthru
          _
      $region59: #{_lambda_.10} parent=5 // pred_fallthru
        _
    $region6: #{_lambda_.10} parent=1 // loop_footer
      %s15 = sadd.s32 1, %s11
    $region7: #{_lambda_.10} parent=1 // loop_footer_branch
      %10 = sbr.rel target = $region3
    $region8: #{_lambda_.10} parent=1 // loop_exit
      _
    %427 = vsyncpa [#allocation3], 1
    %s428 = scalar_lea.sflag [#allocation3], 1
    %429 = vsyncpa %s428, 1

// kernel: tile.49
$region0: #{tile.49}
  #allocation0 [shape = 's32[1]{0}', space=sflag, size = 0x4, scoped, tag = 'scoped memory for tile.49']
  %s0 = inlined_call_operand.vmem [shape: f32[48], index: 0, kind: input, shape index: {}]
  %s1 = inlined_call_operand.vmem [shape: f32[8,48], index: 1, kind: output, shape index: {}]
  // Predicated region
  $region2: #{tile.49} parent=0 // pred_check
    _
  $region3: #{tile.49} parent=0 // pred_check_branch
    %3 = sbr.rel (0) target = $region5
  $region4: #{tile.49} parent=0 // pred_region
    _
  $region5: #{tile.49} parent=0 // pred_fallthru
    _
  %v4 = vld [vmem:[%s0] ss:$0 sm:$0xff]
  %5 = vst [vmem:[%s1] sm:$0xff] %v4

// kernel: _lambda_.11
$region0: #{_lambda_.11}
  #allocation0 [shape = 'u32[]', space=smem, size = 0x4, offset = 0x4, fixed_abs, tag = 'smem constant byte address 0x4 - core index']
  #allocation1 [shape = 'u32[144,128]{1,0:T(1,128)}', space=vmem, size = 0x12000, scoped, tag = 'internal scratch']
  %s0 = inlined_call_operand.vmem [shape: f32[16,384], index: 0, kind: input, shape index: {}]
  %s1 = inlined_call_operand.vmem [shape: f32[1,384], index: 1, kind: input, shape index: {}]
  %s2 = inlined_call_operand.vmem [shape: f32[1,384], index: 2, kind: input, shape index: {}]
  %s3 = inlined_call_operand.vmem [shape: f32[16,384], index: 3, kind: output, shape index: {}]
  %s4 = sld [smem:[#allocation0]]
  $region22: #{_lambda_.11} parent=0
    _
  %s6 = ssub.s32 1, %s4
  %s7 = scalar_select 0, %s6, %s4
  // Predicated region
  $region2: #{_lambda_.11} parent=0 // pred_check
    _
  $region3: #{_lambda_.11} parent=0 // pred_check_branch
    %9 = sbr.rel (0) target = $region5
  $region4: #{_lambda_.11} parent=0 // pred_region
    _
  $region5: #{_lambda_.11} parent=0 // pred_fallthru
    _
  // Predicated region
  $region6: #{_lambda_.11} parent=0 // pred_check
    _
  $region7: #{_lambda_.11} parent=0 // pred_check_branch
    %11 = sbr.rel (0) target = $region9
  $region8: #{_lambda_.11} parent=0 // pred_region
    _
  $region9: #{_lambda_.11} parent=0 // pred_fallthru
    _
  // Predicated region
  $region10: #{_lambda_.11} parent=0 // pred_check
    _
  $region11: #{_lambda_.11} parent=0 // pred_check_branch
    %13 = sbr.rel (0) target = $region13
  $region12: #{_lambda_.11} parent=0 // pred_region
    _
  $region13: #{_lambda_.11} parent=0 // pred_fallthru
    _
  %v14 = vld [vmem:[%s0] sm:$0xff]
  %v15 = vld [vmem:[%s0 + $0x8] sm:$0xff]
  %v16 = vld [vmem:[%s0 + $0x10] sm:$0xff]
  %v17 = vld [vmem:[%s0 + $0x18] sm:$0xff]
  %v18 = vld [vmem:[%s0 + $0x20] sm:$0xff]
  %v19 = vld [vmem:[%s0 + $0x28] sm:$0xff]
  %v20 = vld [vmem:[%s1] sm:$0x7]
  %v22 = vlaneseq
  %v23 = vshrl.u32 %v22, 7
  %v24 = vsub.s32 0, %v23
  %v25 = vrot.slane %v20, %v24
  %v26 = vlaneseq
  %v27 = vshrl.u32 %v26, 7
  %v28 = vsub.s32 1, %v27
  %v29 = vrot.slane %v20, %v28
  %v30 = vlaneseq
  %v31 = vshrl.u32 %v30, 7
  %v32 = vsub.s32 2, %v31
  %v33 = vrot.slane %v20, %v32
  %v37 = vmul.f32 %v14, %v25
  %v38 = vmul.f32 %v15, %v29
  %v39 = vmul.f32 %v16, %v33
  %v40 = vmul.f32 %v17, %v25
  %v41 = vmul.f32 %v18, %v29
  %v42 = vmul.f32 %v19, %v33
  %v43 = vld [vmem:[%s2] sm:$0x7]
  %v45 = vlaneseq
  %v46 = vshrl.u32 %v45, 7
  %v47 = vsub.s32 0, %v46
  %v48 = vrot.slane %v43, %v47
  %v49 = vlaneseq
  %v50 = vshrl.u32 %v49, 7
  %v51 = vsub.s32 1, %v50
  %v52 = vrot.slane %v43, %v51
  %v53 = vlaneseq
  %v54 = vshrl.u32 %v53, 7
  %v55 = vsub.s32 2, %v54
  %v56 = vrot.slane %v43, %v55
  %v60 = vadd.f32 %v37, %v48
  %v61 = vadd.f32 %v38, %v52
  %v62 = vadd.f32 %v39, %v56
  %v63 = vadd.f32 %v40, %v48
  %v64 = vadd.f32 %v41, %v52
  %v65 = vadd.f32 %v42, %v56
  %v66 = vmax.f32 %v60, 0.0
  %v67 = vmax.f32 %v61, 0.0
  %v68 = vmax.f32 %v62, 0.0
  %v69 = vmax.f32 %v63, 0.0
  %v70 = vmax.f32 %v64, 0.0
  %v71 = vmax.f32 %v65, 0.0
  %72 = vst [vmem:[%s3] sm:$0xff] %v66
  %73 = vst [vmem:[%s3 + $0x8] sm:$0xff] %v67
  %74 = vst [vmem:[%s3 + $0x10] sm:$0xff] %v68
  %75 = vst [vmem:[%s3 + $0x18] sm:$0xff] %v69
  %76 = vst [vmem:[%s3 + $0x20] sm:$0xff] %v70
  %77 = vst [vmem:[%s3 + $0x28] sm:$0xff] %v71
  // Predicated region
  $region14: #{_lambda_.11} parent=0 // pred_check
    _
  $region15: #{_lambda_.11} parent=0 // pred_check_branch
    %79 = sbr.rel (0) target = $region17
  $region16: #{_lambda_.11} parent=0 // pred_region
    _
  $region17: #{_lambda_.11} parent=0 // pred_fallthru
    _
  // Predicated region
  $region18: #{_lambda_.11} parent=0 // pred_check
    _
  $region19: #{_lambda_.11} parent=0 // pred_check_branch
    %81 = sbr.rel (0) target = $region21
  $region20: #{_lambda_.11} parent=0 // pred_region
    _
  $region21: #{_lambda_.11} parent=0 // pred_fallthru
    _

// kernel: _lambda_.12
$region0: #{_lambda_.12}
  #allocation0 [shape = 'u32[]', space=smem, size = 0x4, offset = 0x4, fixed_abs, tag = 'smem constant byte address 0x4 - core index']
  #allocation1 [shape = 'u32[144,128]{1,0:T(1,128)}', space=vmem, size = 0x12000, scoped, tag = 'internal scratch']
  %s0 = inlined_call_operand.vmem [shape: bf16[128,128], index: 0, kind: input, shape index: {}]
  %s1 = inlined_call_operand.vmem [shape: bf16[128,384], index: 1, kind: input, shape index: {}]
  %s2 = inlined_call_operand.vmem [shape: f32[128,384], index: 2, kind: output, shape index: {}]
  %s3 = sld [smem:[#allocation0]]
  $region18: #{_lambda_.12} parent=0
    _
  %s5 = ssub.s32 1, %s3
  %s6 = scalar_select 0, %s5, %s3
  // Predicated region
  $region2: #{_lambda_.12} parent=0 // pred_check
    _
  $region3: #{_lambda_.12} parent=0 // pred_check_branch
    %8 = sbr.rel (0) target = $region5
  $region4: #{_lambda_.12} parent=0 // pred_region
    _
  $region5: #{_lambda_.12} parent=0 // pred_fallthru
    _
  // Predicated region
  $region6: #{_lambda_.12} parent=0 // pred_check
    _
  $region7: #{_lambda_.12} parent=0 // pred_check_branch
    %10 = sbr.rel (0) target = $region9
  $region8: #{_lambda_.12} parent=0 // pred_region
    _
  $region9: #{_lambda_.12} parent=0 // pred_fallthru
    _
  %v12 = vld [vmem:[%s0] sm:$0xf]
  %v13 = vld [vmem:[%s0 + $0x4] sm:$0xf]
  %v14 = vld [vmem:[%s0 + $0x8] sm:$0xf]
  %v15 = vld [vmem:[%s0 + $0xc] sm:$0xf]
  %v16 = vld [vmem:[%s0 + $0x10] sm:$0xf]
  %v17 = vld [vmem:[%s0 + $0x14] sm:$0xf]
  %v18 = vld [vmem:[%s0 + $0x18] sm:$0xf]
  %v19 = vld [vmem:[%s0 + $0x1c] sm:$0xf]
  %v20 = vld [vmem:[%s0 + $0x20] sm:$0xf]
  %v21 = vld [vmem:[%s0 + $0x24] sm:$0xf]
  %v22 = vld [vmem:[%s0 + $0x28] sm:$0xf]
  %v23 = vld [vmem:[%s0 + $0x2c] sm:$0xf]
  %v24 = vld [vmem:[%s0 + $0x30] sm:$0xf]
  %v25 = vld [vmem:[%s0 + $0x34] sm:$0xf]
  %v26 = vld [vmem:[%s0 + $0x38] sm:$0xf]
  %v27 = vld [vmem:[%s0 + $0x3c] sm:$0xf]
  %v28 = vld [vmem:[%s1] sm:$0xff]
  %v29 = vld [vmem:[%s1 + $0x8] sm:$0xf]
  %v30 = vld [vmem:[%s1 + $0xc] sm:$0xff]
  %v31 = vld [vmem:[%s1 + $0x14] sm:$0xf]
  %v32 = vld [vmem:[%s1 + $0x18] sm:$0xff]
  %v33 = vld [vmem:[%s1 + $0x20] sm:$0xf]
  %v34 = vld [vmem:[%s1 + $0x24] sm:$0xff]
  %v35 = vld [vmem:[%s1 + $0x2c] sm:$0xf]
  %v36 = vld [vmem:[%s1 + $0x30] sm:$0xff]
  %v37 = vld [vmem:[%s1 + $0x38] sm:$0xf]
  %v38 = vld [vmem:[%s1 + $0x3c] sm:$0xff]
  %v39 = vld [vmem:[%s1 + $0x44] sm:$0xf]
  %v40 = vld [vmem:[%s1 + $0x48] sm:$0xff]
  %v41 = vld [vmem:[%s1 + $0x50] sm:$0xf]
  %v42 = vld [vmem:[%s1 + $0x54] sm:$0xff]
  %v43 = vld [vmem:[%s1 + $0x5c] sm:$0xf]
  %v44 = vld [vmem:[%s1 + $0x60] sm:$0xff]
  %v45 = vld [vmem:[%s1 + $0x68] sm:$0xf]
  %v46 = vld [vmem:[%s1 + $0x6c] sm:$0xff]
  %v47 = vld [vmem:[%s1 + $0x74] sm:$0xf]
  %v48 = vld [vmem:[%s1 + $0x78] sm:$0xff]
  %v49 = vld [vmem:[%s1 + $0x80] sm:$0xf]
  %v50 = vld [vmem:[%s1 + $0x84] sm:$0xff]
  %v51 = vld [vmem:[%s1 + $0x8c] sm:$0xf]
  %v52 = vld [vmem:[%s1 + $0x90] sm:$0xff]
  %v53 = vld [vmem:[%s1 + $0x98] sm:$0xf]
  %v54 = vld [vmem:[%s1 + $0x9c] sm:$0xff]
  %v55 = vld [vmem:[%s1 + $0xa4] sm:$0xf]
  %v56 = vld [vmem:[%s1 + $0xa8] sm:$0xff]
  %v57 = vld [vmem:[%s1 + $0xb0] sm:$0xf]
  %v58 = vld [vmem:[%s1 + $0xb4] sm:$0xff]
  %v59 = vld [vmem:[%s1 + $0xbc] sm:$0xf]
  %v76 = vunpack.c.l.b16 %v12
  %v77 = vunpack.c.l.b16 %v13
  %v78 = vunpack.c.l.b16 %v14
  %v79 = vunpack.c.l.b16 %v15
  %v80 = vunpack.c.l.b16 %v16
  %v81 = vunpack.c.l.b16 %v17
  %v82 = vunpack.c.l.b16 %v18
  %v83 = vunpack.c.l.b16 %v19
  %v84 = vunpack.c.l.b16 %v20
  %v85 = vunpack.c.l.b16 %v21
  %v86 = vunpack.c.l.b16 %v22
  %v87 = vunpack.c.l.b16 %v23
  %v88 = vunpack.c.l.b16 %v24
  %v89 = vunpack.c.l.b16 %v25
  %v90 = vunpack.c.l.b16 %v26
  %v91 = vunpack.c.l.b16 %v27
  %v92 = vpack.c.b16 %v77, %v76
  %v93 = vpack.c.b16 %v79, %v78
  %v94 = vpack.c.b16 %v81, %v80
  %v95 = vpack.c.b16 %v83, %v82
  %v96 = vpack.c.b16 %v85, %v84
  %v97 = vpack.c.b16 %v87, %v86
  %v98 = vpack.c.b16 %v89, %v88
  %v99 = vpack.c.b16 %v91, %v90
  %v140 = vunpack.c.l.b16 %v28
  %v141 = vunpack.c.h.b16 %v28
  %v142 = vunpack.c.l.b16 %v29
  %v143 = vunpack.c.l.b16 %v30
  %v144 = vunpack.c.h.b16 %v30
  %v145 = vunpack.c.l.b16 %v31
  %v146 = vunpack.c.l.b16 %v32
  %v147 = vunpack.c.h.b16 %v32
  %v148 = vunpack.c.l.b16 %v33
  %v149 = vunpack.c.l.b16 %v34
  %v150 = vunpack.c.h.b16 %v34
  %v151 = vunpack.c.l.b16 %v35
  %v152 = vunpack.c.l.b16 %v36
  %v153 = vunpack.c.h.b16 %v36
  %v154 = vunpack.c.l.b16 %v37
  %v155 = vunpack.c.l.b16 %v38
  %v156 = vunpack.c.h.b16 %v38
  %v157 = vunpack.c.l.b16 %v39
  %v158 = vunpack.c.l.b16 %v40
  %v159 = vunpack.c.h.b16 %v40
  %v160 = vunpack.c.l.b16 %v41
  %v161 = vunpack.c.l.b16 %v42
  %v162 = vunpack.c.h.b16 %v42
  %v163 = vunpack.c.l.b16 %v43
  %v164 = vunpack.c.l.b16 %v44
  %v165 = vunpack.c.h.b16 %v44
  %v166 = vunpack.c.l.b16 %v45
  %v167 = vunpack.c.l.b16 %v46
  %v168 = vunpack.c.h.b16 %v46
  %v169 = vunpack.c.l.b16 %v47
  %v170 = vunpack.c.l.b16 %v48
  %v171 = vunpack.c.h.b16 %v48
  %v172 = vunpack.c.l.b16 %v49
  %v173 = vunpack.c.l.b16 %v50
  %v174 = vunpack.c.h.b16 %v50
  %v175 = vunpack.c.l.b16 %v51
  %v176 = vunpack.c.l.b16 %v52
  %v177 = vunpack.c.h.b16 %v52
  %v178 = vunpack.c.l.b16 %v53
  %v179 = vunpack.c.l.b16 %v54
  %v180 = vunpack.c.h.b16 %v54
  %v181 = vunpack.c.l.b16 %v55
  %v182 = vunpack.c.l.b16 %v56
  %v183 = vunpack.c.h.b16 %v56
  %v184 = vunpack.c.l.b16 %v57
  %v185 = vunpack.c.l.b16 %v58
  %v186 = vunpack.c.h.b16 %v58
  %v187 = vunpack.c.l.b16 %v59
  %v188 = vpack.c.b16 %v143, %v140
  %v189 = vpack.c.b16 %v144, %v141
  %v190 = vpack.c.b16 %v145, %v142
  %v191 = vpack.c.b16 %v149, %v146
  %v192 = vpack.c.b16 %v150, %v147
  %v193 = vpack.c.b16 %v151, %v148
  %v194 = vpack.c.b16 %v155, %v152
  %v195 = vpack.c.b16 %v156, %v153
  %v196 = vpack.c.b16 %v157, %v154
  %v197 = vpack.c.b16 %v161, %v158
  %v198 = vpack.c.b16 %v162, %v159
  %v199 = vpack.c.b16 %v163, %v160
  %v200 = vpack.c.b16 %v167, %v164
  %v201 = vpack.c.b16 %v168, %v165
  %v202 = vpack.c.b16 %v169, %v166
  %v203 = vpack.c.b16 %v173, %v170
  %v204 = vpack.c.b16 %v174, %v171
  %v205 = vpack.c.b16 %v175, %v172
  %v206 = vpack.c.b16 %v179, %v176
  %v207 = vpack.c.b16 %v180, %v177
  %v208 = vpack.c.b16 %v181, %v178
  %v209 = vpack.c.b16 %v185, %v182
  %v210 = vpack.c.b16 %v186, %v183
  %v211 = vpack.c.b16 %v187, %v184
  %236 = vmatprep.subr.bf16.mxu0 %v210
  %237 = vmatpush1.bf16.msra.mxu0 %v209
  %238 = vmatprep.subr.bf16.mxu0 %v207
  %239 = vmatpush1.bf16.msra.mxu0 %v206
  %240 = vmatprep.subr.bf16.mxu0 %v204
  %241 = vmatpush1.bf16.msra.mxu0 %v203
  %242 = vmatprep.subr.bf16.mxu0 %v201
  %243 = vmatpush1.bf16.msra.mxu0 %v200
  %244 = vmatprep.subr.bf16.mxu0 %v198
  %245 = vmatpush1.bf16.msra.mxu0 %v197
  %246 = vmatprep.subr.bf16.mxu0 %v195
  %247 = vmatpush1.bf16.msra.mxu0 %v194
  %248 = vmatprep.subr.bf16.mxu0 %v192
  %249 = vmatpush1.bf16.msra.mxu0 %v191
  %250 = vmatprep.subr.bf16.mxu0 %v189
  %251 = vmatpush1.bf16.msra.mxu0 %v188
  %252 = vmatprep.subr.bf16.mxu0 0
  %253 = vmatpush2.bf16.msra.mxu0 0
  %254 = vmatprep.subr.bf16.mxu0 0
  %255 = vmatpush2.bf16.msra.mxu0 0
  %256 = vmatprep.subr.bf16.mxu0 0
  %257 = vmatpush2.bf16.msra.mxu0 0
  %258 = vmatprep.subr.bf16.mxu0 0
  %259 = vmatpush2.bf16.msra.mxu0 0
  %260 = vmatprep.subr.bf16.mxu0 0
  %261 = vmatpush2.bf16.msra.mxu0 0
  %262 = vmatprep.subr.bf16.mxu0 0
  %263 = vmatpush2.bf16.msra.mxu0 0
  %264 = vmatprep.subr.bf16.mxu0 0
  %265 = vmatpush2.bf16.msra.mxu0 0
  %266 = vmatprep.subr.bf16.mxu0 0
  %267 = vmatpush2.bf16.msra.mxu0 0
  %268 = vmatprep.mubr.bf16.mxu0 0
  %269 = vmatmul.mubr.bf16.gmra.mxu0 %v92
  %v270 = vpop.f32.mrf.mxu0
  %v271 = vadd.f32 0.0, %v270
  %v272 = vpop.f32.mrf.mxu0
  %v273 = vadd.f32 0.0, %v272
  %v274 = vpop.f32.mrf.mxu0
  %v275 = vadd.f32 0.0, %v274
  %v276 = vpop.f32.mrf.mxu0
  %v277 = vadd.f32 0.0, %v276
  %278 = vmatprep.mubr.bf16.mxu0 0
  %279 = vmatmul.mubr.bf16.gmra.mxu0 %v93
  %v280 = vpop.f32.mrf.mxu0
  %v281 = vadd.f32 0.0, %v280
  %v282 = vpop.f32.mrf.mxu0
  %v283 = vadd.f32 0.0, %v282
  %v284 = vpop.f32.mrf.mxu0
  %v285 = vadd.f32 0.0, %v284
  %v286 = vpop.f32.mrf.mxu0
  %v287 = vadd.f32 0.0, %v286
  %288 = vmatprep.mubr.bf16.mxu0 0
  %289 = vmatmul.mubr.bf16.gmra.mxu0 %v94
  %v290 = vpop.f32.mrf.mxu0
  %v291 = vadd.f32 0.0, %v290
  %v292 = vpop.f32.mrf.mxu0
  %v293 = vadd.f32 0.0, %v292
  %v294 = vpop.f32.mrf.mxu0
  %v295 = vadd.f32 0.0, %v294
  %v296 = vpop.f32.mrf.mxu0
  %v297 = vadd.f32 0.0, %v296
  %298 = vmatprep.mubr.bf16.mxu0 0
  %299 = vmatmul.mubr.bf16.gmra.mxu0 %v95
  %v300 = vpop.f32.mrf.mxu0
  %v301 = vadd.f32 0.0, %v300
  %v302 = vpop.f32.mrf.mxu0
  %v303 = vadd.f32 0.0, %v302
  %v304 = vpop.f32.mrf.mxu0
  %v305 = vadd.f32 0.0, %v304
  %v306 = vpop.f32.mrf.mxu0
  %v307 = vadd.f32 0.0, %v306
  %308 = vmatprep.mubr.bf16.mxu0 0
  %309 = vmatmul.mubr.bf16.gmra.mxu0 %v96
  %v310 = vpop.f32.mrf.mxu0
  %v311 = vadd.f32 0.0, %v310
  %v312 = vpop.f32.mrf.mxu0
  %v313 = vadd.f32 0.0, %v312
  %v314 = vpop.f32.mrf.mxu0
  %v315 = vadd.f32 0.0, %v314
  %v316 = vpop.f32.mrf.mxu0
  %v317 = vadd.f32 0.0, %v316
  %318 = vmatprep.mubr.bf16.mxu0 0
  %319 = vmatmul.mubr.bf16.gmra.mxu0 %v97
  %v320 = vpop.f32.mrf.mxu0
  %v321 = vadd.f32 0.0, %v320
  %v322 = vpop.f32.mrf.mxu0
  %v323 = vadd.f32 0.0, %v322
  %v324 = vpop.f32.mrf.mxu0
  %v325 = vadd.f32 0.0, %v324
  %v326 = vpop.f32.mrf.mxu0
  %v327 = vadd.f32 0.0, %v326
  %328 = vmatprep.mubr.bf16.mxu0 0
  %329 = vmatmul.mubr.bf16.gmra.mxu0 %v98
  %v330 = vpop.f32.mrf.mxu0
  %v331 = vadd.f32 0.0, %v330
  %v332 = vpop.f32.mrf.mxu0
  %v333 = vadd.f32 0.0, %v332
  %v334 = vpop.f32.mrf.mxu0
  %v335 = vadd.f32 0.0, %v334
  %v336 = vpop.f32.mrf.mxu0
  %v337 = vadd.f32 0.0, %v336
  %338 = vmatprep.mubr.bf16.mxu0 0
  %339 = vmatmul.mubr.bf16.gmra.mxu0 %v99
  %v340 = vpop.f32.mrf.mxu0
  %v341 = vadd.f32 0.0, %v340
  %v342 = vpop.f32.mrf.mxu0
  %v343 = vadd.f32 0.0, %v342
  %v344 = vpop.f32.mrf.mxu0
  %v345 = vadd.f32 0.0, %v344
  %v346 = vpop.f32.mrf.mxu0
  %v347 = vadd.f32 0.0, %v346
  %348 = vdwg.mxu0
  %349 = vmatprep.subr.bf16.mxu0 0
  %350 = vmatpush1.bf16.msra.mxu0 %v211
  %351 = vmatprep.subr.bf16.mxu0 0
  %352 = vmatpush1.bf16.msra.mxu0 %v208
  %353 = vmatprep.subr.bf16.mxu0 0
  %354 = vmatpush1.bf16.msra.mxu0 %v205
  %355 = vmatprep.subr.bf16.mxu0 0
  %356 = vmatpush1.bf16.msra.mxu0 %v202
  %357 = vmatprep.subr.bf16.mxu0 0
  %358 = vmatpush1.bf16.msra.mxu0 %v199
  %359 = vmatprep.subr.bf16.mxu0 0
  %360 = vmatpush1.bf16.msra.mxu0 %v196
  %361 = vmatprep.subr.bf16.mxu0 0
  %362 = vmatpush1.bf16.msra.mxu0 %v193
  %363 = vmatprep.subr.bf16.mxu0 0
  %364 = vmatpush1.bf16.msra.mxu0 %v190
  %365 = vmatprep.subr.bf16.mxu0 0
  %366 = vmatpush2.bf16.msra.mxu0 0
  %367 = vmatprep.subr.bf16.mxu0 0
  %368 = vmatpush2.bf16.msra.mxu0 0
  %369 = vmatprep.subr.bf16.mxu0 0
  %370 = vmatpush2.bf16.msra.mxu0 0
  %371 = vmatprep.subr.bf16.mxu0 0
  %372 = vmatpush2.bf16.msra.mxu0 0
  %373 = vmatprep.subr.bf16.mxu0 0
  %374 = vmatpush2.bf16.msra.mxu0 0
  %375 = vmatprep.subr.bf16.mxu0 0
  %376 = vmatpush2.bf16.msra.mxu0 0
  %377 = vmatprep.subr.bf16.mxu0 0
  %378 = vmatpush2.bf16.msra.mxu0 0
  %379 = vmatprep.subr.bf16.mxu0 0
  %380 = vmatpush2.bf16.msra.mxu0 0
  %381 = vmatprep.mubr.bf16.mxu0 0
  %382 = vmatmul.mubr.bf16.gmra.mxu0 %v92
  %v383 = vpop.f32.mrf.mxu0
  %v384 = vadd.f32 0.0, %v383
  %v385 = vpop.f32.mrf.mxu0
  %v386 = vpop.f32.mrf.mxu0
  %v387 = vadd.f32 0.0, %v386
  %v388 = vpop.f32.mrf.mxu0
  %389 = vmatprep.mubr.bf16.mxu0 0
  %390 = vmatmul.mubr.bf16.gmra.mxu0 %v93
  %v391 = vpop.f32.mrf.mxu0
  %v392 = vadd.f32 0.0, %v391
  %v393 = vpop.f32.mrf.mxu0
  %v394 = vpop.f32.mrf.mxu0
  %v395 = vadd.f32 0.0, %v394
  %v396 = vpop.f32.mrf.mxu0
  %397 = vmatprep.mubr.bf16.mxu0 0
  %398 = vmatmul.mubr.bf16.gmra.mxu0 %v94
  %v399 = vpop.f32.mrf.mxu0
  %v400 = vadd.f32 0.0, %v399
  %v401 = vpop.f32.mrf.mxu0
  %v402 = vpop.f32.mrf.mxu0
  %v403 = vadd.f32 0.0, %v402
  %v404 = vpop.f32.mrf.mxu0
  %405 = vmatprep.mubr.bf16.mxu0 0
  %406 = vmatmul.mubr.bf16.gmra.mxu0 %v95
  %v407 = vpop.f32.mrf.mxu0
  %v408 = vadd.f32 0.0, %v407
  %v409 = vpop.f32.mrf.mxu0
  %v410 = vpop.f32.mrf.mxu0
  %v411 = vadd.f32 0.0, %v410
  %v412 = vpop.f32.mrf.mxu0
  %413 = vmatprep.mubr.bf16.mxu0 0
  %414 = vmatmul.mubr.bf16.gmra.mxu0 %v96
  %v415 = vpop.f32.mrf.mxu0
  %v416 = vadd.f32 0.0, %v415
  %v417 = vpop.f32.mrf.mxu0
  %v418 = vpop.f32.mrf.mxu0
  %v419 = vadd.f32 0.0, %v418
  %v420 = vpop.f32.mrf.mxu0
  %421 = vmatprep.mubr.bf16.mxu0 0
  %422 = vmatmul.mubr.bf16.gmra.mxu0 %v97
  %v423 = vpop.f32.mrf.mxu0
  %v424 = vadd.f32 0.0, %v423
  %v425 = vpop.f32.mrf.mxu0
  %v426 = vpop.f32.mrf.mxu0
  %v427 = vadd.f32 0.0, %v426
  %v428 = vpop.f32.mrf.mxu0
  %429 = vmatprep.mubr.bf16.mxu0 0
  %430 = vmatmul.mubr.bf16.gmra.mxu0 %v98
  %v431 = vpop.f32.mrf.mxu0
  %v432 = vadd.f32 0.0, %v431
  %v433 = vpop.f32.mrf.mxu0
  %v434 = vpop.f32.mrf.mxu0
  %v435 = vadd.f32 0.0, %v434
  %v436 = vpop.f32.mrf.mxu0
  %437 = vmatprep.mubr.bf16.mxu0 0
  %438 = vmatmul.mubr.bf16.gmra.mxu0 %v99
  %v439 = vpop.f32.mrf.mxu0
  %v440 = vadd.f32 0.0, %v439
  %v441 = vpop.f32.mrf.mxu0
  %v442 = vpop.f32.mrf.mxu0
  %v443 = vadd.f32 0.0, %v442
  %v444 = vpop.f32.mrf.mxu0
  %445 = vdwg.mxu0
  %446 = vst [vmem:[%s2] sm:$0xff] %v271
  %447 = vst [vmem:[%s2 + $0x8] sm:$0xff] %v273
  %448 = vst [vmem:[%s2 + $0x10] sm:$0xff] %v384
  %449 = vst [vmem:[%s2 + $0x18] sm:$0xff] %v275
  %450 = vst [vmem:[%s2 + $0x20] sm:$0xff] %v277
  %451 = vst [vmem:[%s2 + $0x28] sm:$0xff] %v387
  %452 = vst [vmem:[%s2 + $0x30] sm:$0xff] %v281
  %453 = vst [vmem:[%s2 + $0x38] sm:$0xff] %v283
  %454 = vst [vmem:[%s2 + $0x40] sm:$0xff] %v392
  %455 = vst [vmem:[%s2 + $0x48] sm:$0xff] %v285
  %456 = vst [vmem:[%s2 + $0x50] sm:$0xff] %v287
  %457 = vst [vmem:[%s2 + $0x58] sm:$0xff] %v395
  %458 = vst [vmem:[%s2 + $0x60] sm:$0xff] %v291
  %459 = vst [vmem:[%s2 + $0x68] sm:$0xff] %v293
  %460 = vst [vmem:[%s2 + $0x70] sm:$0xff] %v400
  %461 = vst [vmem:[%s2 + $0x78] sm:$0xff] %v295
  %462 = vst [vmem:[%s2 + $0x80] sm:$0xff] %v297
  %463 = vst [vmem:[%s2 + $0x88] sm:$0xff] %v403
  %464 = vst [vmem:[%s2 + $0x90] sm:$0xff] %v301
  %465 = vst [vmem:[%s2 + $0x98] sm:$0xff] %v303
  %466 = vst [vmem:[%s2 + $0xa0] sm:$0xff] %v408
  %467 = vst [vmem:[%s2 + $0xa8] sm:$0xff] %v305
  %468 = vst [vmem:[%s2 + $0xb0] sm:$0xff] %v307
  %469 = vst [vmem:[%s2 + $0xb8] sm:$0xff] %v411
  %470 = vst [vmem:[%s2 + $0xc0] sm:$0xff] %v311
  %471 = vst [vmem:[%s2 + $0xc8] sm:$0xff] %v313
  %472 = vst [vmem:[%s2 + $0xd0] sm:$0xff] %v416
  %473 = vst [vmem:[%s2 + $0xd8] sm:$0xff] %v315
  %474 = vst [vmem:[%s2 + $0xe0] sm:$0xff] %v317
  %475 = vst [vmem:[%s2 + $0xe8] sm:$0xff] %v419
  %476 = vst [vmem:[%s2 + $0xf0] sm:$0xff] %v321
  %477 = vst [vmem:[%s2 + $0xf8] sm:$0xff] %v323
  %478 = vst [vmem:[%s2 + $0x100] sm:$0xff] %v424
  %479 = vst [vmem:[%s2 + $0x108] sm:$0xff] %v325
  %480 = vst [vmem:[%s2 + $0x110] sm:$0xff] %v327
  %481 = vst [vmem:[%s2 + $0x118] sm:$0xff] %v427
  %482 = vst [vmem:[%s2 + $0x120] sm:$0xff] %v331
  %483 = vst [vmem:[%s2 + $0x128] sm:$0xff] %v333
  %484 = vst [vmem:[%s2 + $0x130] sm:$0xff] %v432
  %485 = vst [vmem:[%s2 + $0x138] sm:$0xff] %v335
  %486 = vst [vmem:[%s2 + $0x140] sm:$0xff] %v337
  %487 = vst [vmem:[%s2 + $0x148] sm:$0xff] %v435
  %488 = vst [vmem:[%s2 + $0x150] sm:$0xff] %v341
  %489 = vst [vmem:[%s2 + $0x158] sm:$0xff] %v343
  %490 = vst [vmem:[%s2 + $0x160] sm:$0xff] %v440
  %491 = vst [vmem:[%s2 + $0x168] sm:$0xff] %v345
  %492 = vst [vmem:[%s2 + $0x170] sm:$0xff] %v347
  %493 = vst [vmem:[%s2 + $0x178] sm:$0xff] %v443
  // Predicated region
  $region10: #{_lambda_.12} parent=0 // pred_check
    _
  $region11: #{_lambda_.12} parent=0 // pred_check_branch
    %495 = sbr.rel (0) target = $region13
  $region12: #{_lambda_.12} parent=0 // pred_region
    _
  $region13: #{_lambda_.12} parent=0 // pred_fallthru
    _
  // Predicated region
  $region14: #{_lambda_.12} parent=0 // pred_check
    _
  $region15: #{_lambda_.12} parent=0 // pred_check_branch
    %497 = sbr.rel (0) target = $region17
  $region16: #{_lambda_.12} parent=0 // pred_region
    _
  $region17: #{_lambda_.12} parent=0 // pred_fallthru
    _

// kernel: tile.59
$region0: #{tile.59}
  #allocation0 [shape = 's32[1]{0}', space=sflag, size = 0x4, scoped, tag = 'scoped memory for tile.59']
  %s0 = inlined_call_operand.vmem [shape: f32[24], index: 0, kind: input, shape index: {}]
  %s1 = inlined_call_operand.vmem [shape: f32[16,24], index: 1, kind: output, shape index: {}]
  // Predicated region
  $region2: #{tile.59} parent=0 // pred_check
    _
  $region3: #{tile.59} parent=0 // pred_check_branch
    %3 = sbr.rel (0) target = $region5
  $region4: #{tile.59} parent=0 // pred_region
    _
  $region5: #{tile.59} parent=0 // pred_fallthru
    _
  %v4 = vld [vmem:[%s0] ss:$0 sm:$0xff]
  %5 = vst [vmem:[%s1] sm:$0xff] %v4
  %s6 = scalar_lea.vmem %s1, 8
  %7 = vst [vmem:[%s6] sm:$0xff] %v4

// kernel: _lambda_.13
$region0: #{_lambda_.13}
  #allocation0 [shape = 'u32[]', space=smem, size = 0x4, offset = 0x4, fixed_abs, tag = 'smem constant byte address 0x4 - core index']
  #allocation1 [shape = 'u32[144,128]{1,0:T(1,128)}', space=vmem, size = 0x12000, scoped, tag = 'internal scratch']
  %s0 = inlined_call_operand.vmem [shape: f32[32,384], index: 0, kind: input, shape index: {}]
  %s1 = inlined_call_operand.vmem [shape: f32[1,384], index: 1, kind: input, shape index: {}]
  %s2 = inlined_call_operand.vmem [shape: f32[1,384], index: 2, kind: input, shape index: {}]
  %s3 = inlined_call_operand.vmem [shape: f32[32,384], index: 3, kind: output, shape index: {}]
  %s4 = sld [smem:[#allocation0]]
  $region22: #{_lambda_.13} parent=0
    _
  %s6 = ssub.s32 1, %s4
  %s7 = scalar_select 0, %s6, %s4
  // Predicated region
  $region2: #{_lambda_.13} parent=0 // pred_check
    _
  $region3: #{_lambda_.13} parent=0 // pred_check_branch
    %9 = sbr.rel (0) target = $region5
  $region4: #{_lambda_.13} parent=0 // pred_region
    _
  $region5: #{_lambda_.13} parent=0 // pred_fallthru
    _
  // Predicated region
  $region6: #{_lambda_.13} parent=0 // pred_check
    _
  $region7: #{_lambda_.13} parent=0 // pred_check_branch
    %11 = sbr.rel (0) target = $region9
  $region8: #{_lambda_.13} parent=0 // pred_region
    _
  $region9: #{_lambda_.13} parent=0 // pred_fallthru
    _
  // Predicated region
  $region10: #{_lambda_.13} parent=0 // pred_check
    _
  $region11: #{_lambda_.13} parent=0 // pred_check_branch
    %13 = sbr.rel (0) target = $region13
  $region12: #{_lambda_.13} parent=0 // pred_region
    _
  $region13: #{_lambda_.13} parent=0 // pred_fallthru
    _
  %v14 = vld [vmem:[%s0] sm:$0xff]
  %v15 = vld [vmem:[%s0 + $0x8] sm:$0xff]
  %v16 = vld [vmem:[%s0 + $0x10] sm:$0xff]
  %v17 = vld [vmem:[%s0 + $0x18] sm:$0xff]
  %v18 = vld [vmem:[%s0 + $0x20] sm:$0xff]
  %v19 = vld [vmem:[%s0 + $0x28] sm:$0xff]
  %v20 = vld [vmem:[%s0 + $0x30] sm:$0xff]
  %v21 = vld [vmem:[%s0 + $0x38] sm:$0xff]
  %v22 = vld [vmem:[%s0 + $0x40] sm:$0xff]
  %v23 = vld [vmem:[%s0 + $0x48] sm:$0xff]
  %v24 = vld [vmem:[%s0 + $0x50] sm:$0xff]
  %v25 = vld [vmem:[%s0 + $0x58] sm:$0xff]
  %v26 = vld [vmem:[%s1] sm:$0x7]
  %v28 = vlaneseq
  %v29 = vshrl.u32 %v28, 7
  %v30 = vsub.s32 0, %v29
  %v31 = vrot.slane %v26, %v30
  %v32 = vlaneseq
  %v33 = vshrl.u32 %v32, 7
  %v34 = vsub.s32 1, %v33
  %v35 = vrot.slane %v26, %v34
  %v36 = vlaneseq
  %v37 = vshrl.u32 %v36, 7
  %v38 = vsub.s32 2, %v37
  %v39 = vrot.slane %v26, %v38
  %v43 = vmul.f32 %v14, %v31
  %v44 = vmul.f32 %v15, %v35
  %v45 = vmul.f32 %v16, %v39
  %v46 = vmul.f32 %v17, %v31
  %v47 = vmul.f32 %v18, %v35
  %v48 = vmul.f32 %v19, %v39
  %v49 = vmul.f32 %v20, %v31
  %v50 = vmul.f32 %v21, %v35
  %v51 = vmul.f32 %v22, %v39
  %v52 = vmul.f32 %v23, %v31
  %v53 = vmul.f32 %v24, %v35
  %v54 = vmul.f32 %v25, %v39
  %v55 = vld [vmem:[%s2] sm:$0x7]
  %v57 = vlaneseq
  %v58 = vshrl.u32 %v57, 7
  %v59 = vsub.s32 0, %v58
  %v60 = vrot.slane %v55, %v59
  %v61 = vlaneseq
  %v62 = vshrl.u32 %v61, 7
  %v63 = vsub.s32 1, %v62
  %v64 = vrot.slane %v55, %v63
  %v65 = vlaneseq
  %v66 = vshrl.u32 %v65, 7
  %v67 = vsub.s32 2, %v66
  %v68 = vrot.slane %v55, %v67
  %v72 = vadd.f32 %v43, %v60
  %v73 = vadd.f32 %v44, %v64
  %v74 = vadd.f32 %v45, %v68
  %v75 = vadd.f32 %v46, %v60
  %v76 = vadd.f32 %v47, %v64
  %v77 = vadd.f32 %v48, %v68
  %v78 = vadd.f32 %v49, %v60
  %v79 = vadd.f32 %v50, %v64
  %v80 = vadd.f32 %v51, %v68
  %v81 = vadd.f32 %v52, %v60
  %v82 = vadd.f32 %v53, %v64
  %v83 = vadd.f32 %v54, %v68
  %v84 = vmax.f32 %v72, 0.0
  %v85 = vmax.f32 %v73, 0.0
  %v86 = vmax.f32 %v74, 0.0
  %v87 = vmax.f32 %v75, 0.0
  %v88 = vmax.f32 %v76, 0.0
  %v89 = vmax.f32 %v77, 0.0
  %v90 = vmax.f32 %v78, 0.0
  %v91 = vmax.f32 %v79, 0.0
  %v92 = vmax.f32 %v80, 0.0
  %v93 = vmax.f32 %v81, 0.0
  %v94 = vmax.f32 %v82, 0.0
  %v95 = vmax.f32 %v83, 0.0
  %96 = vst [vmem:[%s3] sm:$0xff] %v84
  %97 = vst [vmem:[%s3 + $0x8] sm:$0xff] %v85
  %98 = vst [vmem:[%s3 + $0x10] sm:$0xff] %v86
  %99 = vst [vmem:[%s3 + $0x18] sm:$0xff] %v87
  %100 = vst [vmem:[%s3 + $0x20] sm:$0xff] %v88
  %101 = vst [vmem:[%s3 + $0x28] sm:$0xff] %v89
  %102 = vst [vmem:[%s3 + $0x30] sm:$0xff] %v90
  %103 = vst [vmem:[%s3 + $0x38] sm:$0xff] %v91
  %104 = vst [vmem:[%s3 + $0x40] sm:$0xff] %v92
  %105 = vst [vmem:[%s3 + $0x48] sm:$0xff] %v93
  %106 = vst [vmem:[%s3 + $0x50] sm:$0xff] %v94
  %107 = vst [vmem:[%s3 + $0x58] sm:$0xff] %v95
  // Predicated region
  $region14: #{_lambda_.13} parent=0 // pred_check
    _
  $region15: #{_lambda_.13} parent=0 // pred_check_branch
    %109 = sbr.rel (0) target = $region17
  $region16: #{_lambda_.13} parent=0 // pred_region
    _
  $region17: #{_lambda_.13} parent=0 // pred_fallthru
    _
  // Predicated region
  $region18: #{_lambda_.13} parent=0 // pred_check
    _
  $region19: #{_lambda_.13} parent=0 // pred_check_branch
    %111 = sbr.rel (0) target = $region21
  $region20: #{_lambda_.13} parent=0 // pred_region
    _
  $region21: #{_lambda_.13} parent=0 // pred_fallthru
    _

// kernel: _lambda_.14
$region0: #{_lambda_.14}
  #allocation0 [shape = 'u32[]', space=smem, size = 0x4, offset = 0x4, fixed_abs, tag = 'smem constant byte address 0x4 - core index']
  #allocation1 [shape = 'u32[144,128]{1,0:T(1,128)}', space=vmem, size = 0x12000, scoped, tag = 'internal scratch']
  %s0 = inlined_call_operand.vmem [shape: bf16[512,128], index: 0, kind: input, shape index: {}]
  %s1 = inlined_call_operand.vmem [shape: bf16[128,128], index: 1, kind: input, shape index: {}]
  %s2 = inlined_call_operand.vmem [shape: f32[512,128], index: 2, kind: output, shape index: {}]
  %s3 = sld [smem:[#allocation0]]
  $region18: #{_lambda_.14} parent=0
    _
  %s5 = ssub.s32 1, %s3
  %s6 = scalar_select 0, %s5, %s3
  // Predicated region
  $region2: #{_lambda_.14} parent=0 // pred_check
    _
  $region3: #{_lambda_.14} parent=0 // pred_check_branch
    %8 = sbr.rel (0) target = $region5
  $region4: #{_lambda_.14} parent=0 // pred_region
    _
  $region5: #{_lambda_.14} parent=0 // pred_fallthru
    _
  // Predicated region
  $region6: #{_lambda_.14} parent=0 // pred_check
    _
  $region7: #{_lambda_.14} parent=0 // pred_check_branch
    %10 = sbr.rel (0) target = $region9
  $region8: #{_lambda_.14} parent=0 // pred_region
    _
  $region9: #{_lambda_.14} parent=0 // pred_fallthru
    _
  %v12 = vld [vmem:[%s0] sm:$0xf]
  %v13 = vld [vmem:[%s0 + $0x4] sm:$0xf]
  %v14 = vld [vmem:[%s0 + $0x8] sm:$0xf]
  %v15 = vld [vmem:[%s0 + $0xc] sm:$0xf]
  %v16 = vld [vmem:[%s0 + $0x10] sm:$0xf]
  %v17 = vld [vmem:[%s0 + $0x14] sm:$0xf]
  %v18 = vld [vmem:[%s0 + $0x18] sm:$0xf]
  %v19 = vld [vmem:[%s0 + $0x1c] sm:$0xf]
  %v20 = vld [vmem:[%s0 + $0x20] sm:$0xf]
  %v21 = vld [vmem:[%s0 + $0x24] sm:$0xf]
  %v22 = vld [vmem:[%s0 + $0x28] sm:$0xf]
  %v23 = vld [vmem:[%s0 + $0x2c] sm:$0xf]
  %v24 = vld [vmem:[%s0 + $0x30] sm:$0xf]
  %v25 = vld [vmem:[%s0 + $0x34] sm:$0xf]
  %v26 = vld [vmem:[%s0 + $0x38] sm:$0xf]
  %v27 = vld [vmem:[%s0 + $0x3c] sm:$0xf]
  %v28 = vld [vmem:[%s0 + $0x40] sm:$0xf]
  %v29 = vld [vmem:[%s0 + $0x44] sm:$0xf]
  %v30 = vld [vmem:[%s0 + $0x48] sm:$0xf]
  %v31 = vld [vmem:[%s0 + $0x4c] sm:$0xf]
  %v32 = vld [vmem:[%s0 + $0x50] sm:$0xf]
  %v33 = vld [vmem:[%s0 + $0x54] sm:$0xf]
  %v34 = vld [vmem:[%s0 + $0x58] sm:$0xf]
  %v35 = vld [vmem:[%s0 + $0x5c] sm:$0xf]
  %v36 = vld [vmem:[%s0 + $0x60] sm:$0xf]
  %v37 = vld [vmem:[%s0 + $0x64] sm:$0xf]
  %v38 = vld [vmem:[%s0 + $0x68] sm:$0xf]
  %v39 = vld [vmem:[%s0 + $0x6c] sm:$0xf]
  %v40 = vld [vmem:[%s0 + $0x70] sm:$0xf]
  %v41 = vld [vmem:[%s0 + $0x74] sm:$0xf]
  %v42 = vld [vmem:[%s0 + $0x78] sm:$0xf]
  %v43 = vld [vmem:[%s0 + $0x7c] sm:$0xf]
  %v44 = vld [vmem:[%s0 + $0x80] sm:$0xf]
  %v45 = vld [vmem:[%s0 + $0x84] sm:$0xf]
  %v46 = vld [vmem:[%s0 + $0x88] sm:$0xf]
  %v47 = vld [vmem:[%s0 + $0x8c] sm:$0xf]
  %v48 = vld [vmem:[%s0 + $0x90] sm:$0xf]
  %v49 = vld [vmem:[%s0 + $0x94] sm:$0xf]
  %v50 = vld [vmem:[%s0 + $0x98] sm:$0xf]
  %v51 = vld [vmem:[%s0 + $0x9c] sm:$0xf]
  %v52 = vld [vmem:[%s0 + $0xa0] sm:$0xf]
  %v53 = vld [vmem:[%s0 + $0xa4] sm:$0xf]
  %v54 = vld [vmem:[%s0 + $0xa8] sm:$0xf]
  %v55 = vld [vmem:[%s0 + $0xac] sm:$0xf]
  %v56 = vld [vmem:[%s0 + $0xb0] sm:$0xf]
  %v57 = vld [vmem:[%s0 + $0xb4] sm:$0xf]
  %v58 = vld [vmem:[%s0 + $0xb8] sm:$0xf]
  %v59 = vld [vmem:[%s0 + $0xbc] sm:$0xf]
  %v60 = vld [vmem:[%s0 + $0xc0] sm:$0xf]
  %v61 = vld [vmem:[%s0 + $0xc4] sm:$0xf]
  %v62 = vld [vmem:[%s0 + $0xc8] sm:$0xf]
  %v63 = vld [vmem:[%s0 + $0xcc] sm:$0xf]
  %v64 = vld [vmem:[%s0 + $0xd0] sm:$0xf]
  %v65 = vld [vmem:[%s0 + $0xd4] sm:$0xf]
  %v66 = vld [vmem:[%s0 + $0xd8] sm:$0xf]
  %v67 = vld [vmem:[%s0 + $0xdc] sm:$0xf]
  %v68 = vld [vmem:[%s0 + $0xe0] sm:$0xf]
  %v69 = vld [vmem:[%s0 + $0xe4] sm:$0xf]
  %v70 = vld [vmem:[%s0 + $0xe8] sm:$0xf]
  %v71 = vld [vmem:[%s0 + $0xec] sm:$0xf]
  %v72 = vld [vmem:[%s0 + $0xf0] sm:$0xf]
  %v73 = vld [vmem:[%s0 + $0xf4] sm:$0xf]
  %v74 = vld [vmem:[%s0 + $0xf8] sm:$0xf]
  %v75 = vld [vmem:[%s0 + $0xfc] sm:$0xf]
  %v76 = vld [vmem:[%s1] sm:$0xf]
  %v77 = vld [vmem:[%s1 + $0x4] sm:$0xf]
  %v78 = vld [vmem:[%s1 + $0x8] sm:$0xf]
  %v79 = vld [vmem:[%s1 + $0xc] sm:$0xf]
  %v80 = vld [vmem:[%s1 + $0x10] sm:$0xf]
  %v81 = vld [vmem:[%s1 + $0x14] sm:$0xf]
  %v82 = vld [vmem:[%s1 + $0x18] sm:$0xf]
  %v83 = vld [vmem:[%s1 + $0x1c] sm:$0xf]
  %v84 = vld [vmem:[%s1 + $0x20] sm:$0xf]
  %v85 = vld [vmem:[%s1 + $0x24] sm:$0xf]
  %v86 = vld [vmem:[%s1 + $0x28] sm:$0xf]
  %v87 = vld [vmem:[%s1 + $0x2c] sm:$0xf]
  %v88 = vld [vmem:[%s1 + $0x30] sm:$0xf]
  %v89 = vld [vmem:[%s1 + $0x34] sm:$0xf]
  %v90 = vld [vmem:[%s1 + $0x38] sm:$0xf]
  %v91 = vld [vmem:[%s1 + $0x3c] sm:$0xf]
  %v156 = vunpack.c.l.b16 %v12
  %v157 = vunpack.c.l.b16 %v13
  %v158 = vunpack.c.l.b16 %v14
  %v159 = vunpack.c.l.b16 %v15
  %v160 = vunpack.c.l.b16 %v16
  %v161 = vunpack.c.l.b16 %v17
  %v162 = vunpack.c.l.b16 %v18
  %v163 = vunpack.c.l.b16 %v19
  %v164 = vunpack.c.l.b16 %v20
  %v165 = vunpack.c.l.b16 %v21
  %v166 = vunpack.c.l.b16 %v22
  %v167 = vunpack.c.l.b16 %v23
  %v168 = vunpack.c.l.b16 %v24
  %v169 = vunpack.c.l.b16 %v25
  %v170 = vunpack.c.l.b16 %v26
  %v171 = vunpack.c.l.b16 %v27
  %v172 = vunpack.c.l.b16 %v28
  %v173 = vunpack.c.l.b16 %v29
  %v174 = vunpack.c.l.b16 %v30
  %v175 = vunpack.c.l.b16 %v31
  %v176 = vunpack.c.l.b16 %v32
  %v177 = vunpack.c.l.b16 %v33
  %v178 = vunpack.c.l.b16 %v34
  %v179 = vunpack.c.l.b16 %v35
  %v180 = vunpack.c.l.b16 %v36
  %v181 = vunpack.c.l.b16 %v37
  %v182 = vunpack.c.l.b16 %v38
  %v183 = vunpack.c.l.b16 %v39
  %v184 = vunpack.c.l.b16 %v40
  %v185 = vunpack.c.l.b16 %v41
  %v186 = vunpack.c.l.b16 %v42
  %v187 = vunpack.c.l.b16 %v43
  %v188 = vunpack.c.l.b16 %v44
  %v189 = vunpack.c.l.b16 %v45
  %v190 = vunpack.c.l.b16 %v46
  %v191 = vunpack.c.l.b16 %v47
  %v192 = vunpack.c.l.b16 %v48
  %v193 = vunpack.c.l.b16 %v49
  %v194 = vunpack.c.l.b16 %v50
  %v195 = vunpack.c.l.b16 %v51
  %v196 = vunpack.c.l.b16 %v52
  %v197 = vunpack.c.l.b16 %v53
  %v198 = vunpack.c.l.b16 %v54
  %v199 = vunpack.c.l.b16 %v55
  %v200 = vunpack.c.l.b16 %v56
  %v201 = vunpack.c.l.b16 %v57
  %v202 = vunpack.c.l.b16 %v58
  %v203 = vunpack.c.l.b16 %v59
  %v204 = vunpack.c.l.b16 %v60
  %v205 = vunpack.c.l.b16 %v61
  %v206 = vunpack.c.l.b16 %v62
  %v207 = vunpack.c.l.b16 %v63
  %v208 = vunpack.c.l.b16 %v64
  %v209 = vunpack.c.l.b16 %v65
  %v210 = vunpack.c.l.b16 %v66
  %v211 = vunpack.c.l.b16 %v67
  %v212 = vunpack.c.l.b16 %v68
  %v213 = vunpack.c.l.b16 %v69
  %v214 = vunpack.c.l.b16 %v70
  %v215 = vunpack.c.l.b16 %v71
  %v216 = vunpack.c.l.b16 %v72
  %v217 = vunpack.c.l.b16 %v73
  %v218 = vunpack.c.l.b16 %v74
  %v219 = vunpack.c.l.b16 %v75
  %v220 = vpack.c.b16 %v157, %v156
  %v221 = vpack.c.b16 %v159, %v158
  %v222 = vpack.c.b16 %v161, %v160
  %v223 = vpack.c.b16 %v163, %v162
  %v224 = vpack.c.b16 %v165, %v164
  %v225 = vpack.c.b16 %v167, %v166
  %v226 = vpack.c.b16 %v169, %v168
  %v227 = vpack.c.b16 %v171, %v170
  %v228 = vpack.c.b16 %v173, %v172
  %v229 = vpack.c.b16 %v175, %v174
  %v230 = vpack.c.b16 %v177, %v176
  %v231 = vpack.c.b16 %v179, %v178
  %v232 = vpack.c.b16 %v181, %v180
  %v233 = vpack.c.b16 %v183, %v182
  %v234 = vpack.c.b16 %v185, %v184
  %v235 = vpack.c.b16 %v187, %v186
  %v236 = vpack.c.b16 %v189, %v188
  %v237 = vpack.c.b16 %v191, %v190
  %v238 = vpack.c.b16 %v193, %v192
  %v239 = vpack.c.b16 %v195, %v194
  %v240 = vpack.c.b16 %v197, %v196
  %v241 = vpack.c.b16 %v199, %v198
  %v242 = vpack.c.b16 %v201, %v200
  %v243 = vpack.c.b16 %v203, %v202
  %v244 = vpack.c.b16 %v205, %v204
  %v245 = vpack.c.b16 %v207, %v206
  %v246 = vpack.c.b16 %v209, %v208
  %v247 = vpack.c.b16 %v211, %v210
  %v248 = vpack.c.b16 %v213, %v212
  %v249 = vpack.c.b16 %v215, %v214
  %v250 = vpack.c.b16 %v217, %v216
  %v251 = vpack.c.b16 %v219, %v218
  %v300 = vunpack.c.l.b16 %v76
  %v301 = vunpack.c.l.b16 %v77
  %v302 = vunpack.c.l.b16 %v78
  %v303 = vunpack.c.l.b16 %v79
  %v304 = vunpack.c.l.b16 %v80
  %v305 = vunpack.c.l.b16 %v81
  %v306 = vunpack.c.l.b16 %v82
  %v307 = vunpack.c.l.b16 %v83
  %v308 = vunpack.c.l.b16 %v84
  %v309 = vunpack.c.l.b16 %v85
  %v310 = vunpack.c.l.b16 %v86
  %v311 = vunpack.c.l.b16 %v87
  %v312 = vunpack.c.l.b16 %v88
  %v313 = vunpack.c.l.b16 %v89
  %v314 = vunpack.c.l.b16 %v90
  %v315 = vunpack.c.l.b16 %v91
  %v316 = vpack.c.b16 %v301, %v300
  %v317 = vpack.c.b16 %v303, %v302
  %v318 = vpack.c.b16 %v305, %v304
  %v319 = vpack.c.b16 %v307, %v306
  %v320 = vpack.c.b16 %v309, %v308
  %v321 = vpack.c.b16 %v311, %v310
  %v322 = vpack.c.b16 %v313, %v312
  %v323 = vpack.c.b16 %v315, %v314
  %332 = vmatprep.subr.bf16.mxu0 0
  %333 = vmatpush1.bf16.msra.mxu0 %v323
  %334 = vmatprep.subr.bf16.mxu0 0
  %335 = vmatpush1.bf16.msra.mxu0 %v322
  %336 = vmatprep.subr.bf16.mxu0 0
  %337 = vmatpush1.bf16.msra.mxu0 %v321
  %338 = vmatprep.subr.bf16.mxu0 0
  %339 = vmatpush1.bf16.msra.mxu0 %v320
  %340 = vmatprep.subr.bf16.mxu0 0
  %341 = vmatpush1.bf16.msra.mxu0 %v319
  %342 = vmatprep.subr.bf16.mxu0 0
  %343 = vmatpush1.bf16.msra.mxu0 %v318
  %344 = vmatprep.subr.bf16.mxu0 0
  %345 = vmatpush1.bf16.msra.mxu0 %v317
  %346 = vmatprep.subr.bf16.mxu0 0
  %347 = vmatpush1.bf16.msra.mxu0 %v316
  %348 = vmatprep.subr.bf16.mxu0 0
  %349 = vmatpush2.bf16.msra.mxu0 0
  %350 = vmatprep.subr.bf16.mxu0 0
  %351 = vmatpush2.bf16.msra.mxu0 0
  %352 = vmatprep.subr.bf16.mxu0 0
  %353 = vmatpush2.bf16.msra.mxu0 0
  %354 = vmatprep.subr.bf16.mxu0 0
  %355 = vmatpush2.bf16.msra.mxu0 0
  %356 = vmatprep.subr.bf16.mxu0 0
  %357 = vmatpush2.bf16.msra.mxu0 0
  %358 = vmatprep.subr.bf16.mxu0 0
  %359 = vmatpush2.bf16.msra.mxu0 0
  %360 = vmatprep.subr.bf16.mxu0 0
  %361 = vmatpush2.bf16.msra.mxu0 0
  %362 = vmatprep.subr.bf16.mxu0 0
  %363 = vmatpush2.bf16.msra.mxu0 0
  %364 = vmatprep.mubr.bf16.mxu0 0
  %365 = vmatmul.mubr.bf16.gmra.mxu0 %v220
  %v366 = vpop.f32.mrf.mxu0
  %v367 = vadd.f32 0.0, %v366
  %v368 = vpop.f32.mrf.mxu0
  %v369 = vpop.f32.mrf.mxu0
  %v370 = vadd.f32 0.0, %v369
  %v371 = vpop.f32.mrf.mxu0
  %372 = vmatprep.mubr.bf16.mxu0 0
  %373 = vmatmul.mubr.bf16.gmra.mxu0 %v221
  %v374 = vpop.f32.mrf.mxu0
  %v375 = vadd.f32 0.0, %v374
  %v376 = vpop.f32.mrf.mxu0
  %v377 = vpop.f32.mrf.mxu0
  %v378 = vadd.f32 0.0, %v377
  %v379 = vpop.f32.mrf.mxu0
  %380 = vmatprep.mubr.bf16.mxu0 0
  %381 = vmatmul.mubr.bf16.gmra.mxu0 %v222
  %v382 = vpop.f32.mrf.mxu0
  %v383 = vadd.f32 0.0, %v382
  %v384 = vpop.f32.mrf.mxu0
  %v385 = vpop.f32.mrf.mxu0
  %v386 = vadd.f32 0.0, %v385
  %v387 = vpop.f32.mrf.mxu0
  %388 = vmatprep.mubr.bf16.mxu0 0
  %389 = vmatmul.mubr.bf16.gmra.mxu0 %v223
  %v390 = vpop.f32.mrf.mxu0
  %v391 = vadd.f32 0.0, %v390
  %v392 = vpop.f32.mrf.mxu0
  %v393 = vpop.f32.mrf.mxu0
  %v394 = vadd.f32 0.0, %v393
  %v395 = vpop.f32.mrf.mxu0
  %396 = vmatprep.mubr.bf16.mxu0 0
  %397 = vmatmul.mubr.bf16.gmra.mxu0 %v224
  %v398 = vpop.f32.mrf.mxu0
  %v399 = vadd.f32 0.0, %v398
  %v400 = vpop.f32.mrf.mxu0
  %v401 = vpop.f32.mrf.mxu0
  %v402 = vadd.f32 0.0, %v401
  %v403 = vpop.f32.mrf.mxu0
  %404 = vmatprep.mubr.bf16.mxu0 0
  %405 = vmatmul.mubr.bf16.gmra.mxu0 %v225
  %v406 = vpop.f32.mrf.mxu0
  %v407 = vadd.f32 0.0, %v406
  %v408 = vpop.f32.mrf.mxu0
  %v409 = vpop.f32.mrf.mxu0
  %v410 = vadd.f32 0.0, %v409
  %v411 = vpop.f32.mrf.mxu0
  %412 = vmatprep.mubr.bf16.mxu0 0
  %413 = vmatmul.mubr.bf16.gmra.mxu0 %v226
  %v414 = vpop.f32.mrf.mxu0
  %v415 = vadd.f32 0.0, %v414
  %v416 = vpop.f32.mrf.mxu0
  %v417 = vpop.f32.mrf.mxu0
  %v418 = vadd.f32 0.0, %v417
  %v419 = vpop.f32.mrf.mxu0
  %420 = vmatprep.mubr.bf16.mxu0 0
  %421 = vmatmul.mubr.bf16.gmra.mxu0 %v227
  %v422 = vpop.f32.mrf.mxu0
  %v423 = vadd.f32 0.0, %v422
  %v424 = vpop.f32.mrf.mxu0
  %v425 = vpop.f32.mrf.mxu0
  %v426 = vadd.f32 0.0, %v425
  %v427 = vpop.f32.mrf.mxu0
  %428 = vmatprep.mubr.bf16.mxu0 0
  %429 = vmatmul.mubr.bf16.gmra.mxu0 %v228
  %v430 = vpop.f32.mrf.mxu0
  %v431 = vadd.f32 0.0, %v430
  %v432 = vpop.f32.mrf.mxu0
  %v433 = vpop.f32.mrf.mxu0
  %v434 = vadd.f32 0.0, %v433
  %v435 = vpop.f32.mrf.mxu0
  %436 = vmatprep.mubr.bf16.mxu0 0
  %437 = vmatmul.mubr.bf16.gmra.mxu0 %v229
  %v438 = vpop.f32.mrf.mxu0
  %v439 = vadd.f32 0.0, %v438
  %v440 = vpop.f32.mrf.mxu0
  %v441 = vpop.f32.mrf.mxu0
  %v442 = vadd.f32 0.0, %v441
  %v443 = vpop.f32.mrf.mxu0
  %444 = vmatprep.mubr.bf16.mxu0 0
  %445 = vmatmul.mubr.bf16.gmra.mxu0 %v230
  %v446 = vpop.f32.mrf.mxu0
  %v447 = vadd.f32 0.0, %v446
  %v448 = vpop.f32.mrf.mxu0
  %v449 = vpop.f32.mrf.mxu0
  %v450 = vadd.f32 0.0, %v449
  %v451 = vpop.f32.mrf.mxu0
  %452 = vmatprep.mubr.bf16.mxu0 0
  %453 = vmatmul.mubr.bf16.gmra.mxu0 %v231
  %v454 = vpop.f32.mrf.mxu0
  %v455 = vadd.f32 0.0, %v454
  %v456 = vpop.f32.mrf.mxu0
  %v457 = vpop.f32.mrf.mxu0
  %v458 = vadd.f32 0.0, %v457
  %v459 = vpop.f32.mrf.mxu0
  %460 = vmatprep.mubr.bf16.mxu0 0
  %461 = vmatmul.mubr.bf16.gmra.mxu0 %v232
  %v462 = vpop.f32.mrf.mxu0
  %v463 = vadd.f32 0.0, %v462
  %v464 = vpop.f32.mrf.mxu0
  %v465 = vpop.f32.mrf.mxu0
  %v466 = vadd.f32 0.0, %v465
  %v467 = vpop.f32.mrf.mxu0
  %468 = vmatprep.mubr.bf16.mxu0 0
  %469 = vmatmul.mubr.bf16.gmra.mxu0 %v233
  %v470 = vpop.f32.mrf.mxu0
  %v471 = vadd.f32 0.0, %v470
  %v472 = vpop.f32.mrf.mxu0
  %v473 = vpop.f32.mrf.mxu0
  %v474 = vadd.f32 0.0, %v473
  %v475 = vpop.f32.mrf.mxu0
  %476 = vmatprep.mubr.bf16.mxu0 0
  %477 = vmatmul.mubr.bf16.gmra.mxu0 %v234
  %v478 = vpop.f32.mrf.mxu0
  %v479 = vadd.f32 0.0, %v478
  %v480 = vpop.f32.mrf.mxu0
  %v481 = vpop.f32.mrf.mxu0
  %v482 = vadd.f32 0.0, %v481
  %v483 = vpop.f32.mrf.mxu0
  %484 = vmatprep.mubr.bf16.mxu0 0
  %485 = vmatmul.mubr.bf16.gmra.mxu0 %v235
  %v486 = vpop.f32.mrf.mxu0
  %v487 = vadd.f32 0.0, %v486
  %v488 = vpop.f32.mrf.mxu0
  %v489 = vpop.f32.mrf.mxu0
  %v490 = vadd.f32 0.0, %v489
  %v491 = vpop.f32.mrf.mxu0
  %492 = vmatprep.mubr.bf16.mxu0 0
  %493 = vmatmul.mubr.bf16.gmra.mxu0 %v236
  %v494 = vpop.f32.mrf.mxu0
  %v495 = vadd.f32 0.0, %v494
  %v496 = vpop.f32.mrf.mxu0
  %v497 = vpop.f32.mrf.mxu0
  %v498 = vadd.f32 0.0, %v497
  %v499 = vpop.f32.mrf.mxu0
  %500 = vmatprep.mubr.bf16.mxu0 0
  %501 = vmatmul.mubr.bf16.gmra.mxu0 %v237
  %v502 = vpop.f32.mrf.mxu0
  %v503 = vadd.f32 0.0, %v502
  %v504 = vpop.f32.mrf.mxu0
  %v505 = vpop.f32.mrf.mxu0
  %v506 = vadd.f32 0.0, %v505
  %v507 = vpop.f32.mrf.mxu0
  %508 = vmatprep.mubr.bf16.mxu0 0
  %509 = vmatmul.mubr.bf16.gmra.mxu0 %v238
  %v510 = vpop.f32.mrf.mxu0
  %v511 = vadd.f32 0.0, %v510
  %v512 = vpop.f32.mrf.mxu0
  %v513 = vpop.f32.mrf.mxu0
  %v514 = vadd.f32 0.0, %v513
  %v515 = vpop.f32.mrf.mxu0
  %516 = vmatprep.mubr.bf16.mxu0 0
  %517 = vmatmul.mubr.bf16.gmra.mxu0 %v239
  %v518 = vpop.f32.mrf.mxu0
  %v519 = vadd.f32 0.0, %v518
  %v520 = vpop.f32.mrf.mxu0
  %v521 = vpop.f32.mrf.mxu0
  %v522 = vadd.f32 0.0, %v521
  %v523 = vpop.f32.mrf.mxu0
  %524 = vmatprep.mubr.bf16.mxu0 0
  %525 = vmatmul.mubr.bf16.gmra.mxu0 %v240
  %v526 = vpop.f32.mrf.mxu0
  %v527 = vadd.f32 0.0, %v526
  %v528 = vpop.f32.mrf.mxu0
  %v529 = vpop.f32.mrf.mxu0
  %v530 = vadd.f32 0.0, %v529
  %v531 = vpop.f32.mrf.mxu0
  %532 = vmatprep.mubr.bf16.mxu0 0
  %533 = vmatmul.mubr.bf16.gmra.mxu0 %v241
  %v534 = vpop.f32.mrf.mxu0
  %v535 = vadd.f32 0.0, %v534
  %v536 = vpop.f32.mrf.mxu0
  %v537 = vpop.f32.mrf.mxu0
  %v538 = vadd.f32 0.0, %v537
  %v539 = vpop.f32.mrf.mxu0
  %540 = vmatprep.mubr.bf16.mxu0 0
  %541 = vmatmul.mubr.bf16.gmra.mxu0 %v242
  %v542 = vpop.f32.mrf.mxu0
  %v543 = vadd.f32 0.0, %v542
  %v544 = vpop.f32.mrf.mxu0
  %v545 = vpop.f32.mrf.mxu0
  %v546 = vadd.f32 0.0, %v545
  %v547 = vpop.f32.mrf.mxu0
  %548 = vmatprep.mubr.bf16.mxu0 0
  %549 = vmatmul.mubr.bf16.gmra.mxu0 %v243
  %v550 = vpop.f32.mrf.mxu0
  %v551 = vadd.f32 0.0, %v550
  %v552 = vpop.f32.mrf.mxu0
  %v553 = vpop.f32.mrf.mxu0
  %v554 = vadd.f32 0.0, %v553
  %v555 = vpop.f32.mrf.mxu0
  %556 = vmatprep.mubr.bf16.mxu0 0
  %557 = vmatmul.mubr.bf16.gmra.mxu0 %v244
  %v558 = vpop.f32.mrf.mxu0
  %v559 = vadd.f32 0.0, %v558
  %v560 = vpop.f32.mrf.mxu0
  %v561 = vpop.f32.mrf.mxu0
  %v562 = vadd.f32 0.0, %v561
  %v563 = vpop.f32.mrf.mxu0
  %564 = vmatprep.mubr.bf16.mxu0 0
  %565 = vmatmul.mubr.bf16.gmra.mxu0 %v245
  %v566 = vpop.f32.mrf.mxu0
  %v567 = vadd.f32 0.0, %v566
  %v568 = vpop.f32.mrf.mxu0
  %v569 = vpop.f32.mrf.mxu0
  %v570 = vadd.f32 0.0, %v569
  %v571 = vpop.f32.mrf.mxu0
  %572 = vmatprep.mubr.bf16.mxu0 0
  %573 = vmatmul.mubr.bf16.gmra.mxu0 %v246
  %v574 = vpop.f32.mrf.mxu0
  %v575 = vadd.f32 0.0, %v574
  %v576 = vpop.f32.mrf.mxu0
  %v577 = vpop.f32.mrf.mxu0
  %v578 = vadd.f32 0.0, %v577
  %v579 = vpop.f32.mrf.mxu0
  %580 = vmatprep.mubr.bf16.mxu0 0
  %581 = vmatmul.mubr.bf16.gmra.mxu0 %v247
  %v582 = vpop.f32.mrf.mxu0
  %v583 = vadd.f32 0.0, %v582
  %v584 = vpop.f32.mrf.mxu0
  %v585 = vpop.f32.mrf.mxu0
  %v586 = vadd.f32 0.0, %v585
  %v587 = vpop.f32.mrf.mxu0
  %588 = vmatprep.mubr.bf16.mxu0 0
  %589 = vmatmul.mubr.bf16.gmra.mxu0 %v248
  %v590 = vpop.f32.mrf.mxu0
  %v591 = vadd.f32 0.0, %v590
  %v592 = vpop.f32.mrf.mxu0
  %v593 = vpop.f32.mrf.mxu0
  %v594 = vadd.f32 0.0, %v593
  %v595 = vpop.f32.mrf.mxu0
  %596 = vmatprep.mubr.bf16.mxu0 0
  %597 = vmatmul.mubr.bf16.gmra.mxu0 %v249
  %v598 = vpop.f32.mrf.mxu0
  %v599 = vadd.f32 0.0, %v598
  %v600 = vpop.f32.mrf.mxu0
  %v601 = vpop.f32.mrf.mxu0
  %v602 = vadd.f32 0.0, %v601
  %v603 = vpop.f32.mrf.mxu0
  %604 = vmatprep.mubr.bf16.mxu0 0
  %605 = vmatmul.mubr.bf16.gmra.mxu0 %v250
  %v606 = vpop.f32.mrf.mxu0
  %v607 = vadd.f32 0.0, %v606
  %v608 = vpop.f32.mrf.mxu0
  %v609 = vpop.f32.mrf.mxu0
  %v610 = vadd.f32 0.0, %v609
  %v611 = vpop.f32.mrf.mxu0
  %612 = vmatprep.mubr.bf16.mxu0 0
  %613 = vmatmul.mubr.bf16.gmra.mxu0 %v251
  %v614 = vpop.f32.mrf.mxu0
  %v615 = vadd.f32 0.0, %v614
  %v616 = vpop.f32.mrf.mxu0
  %v617 = vpop.f32.mrf.mxu0
  %v618 = vadd.f32 0.0, %v617
  %v619 = vpop.f32.mrf.mxu0
  %620 = vdwg.mxu0
  %621 = vst [vmem:[%s2] sm:$0xff] %v367
  %622 = vst [vmem:[%s2 + $0x8] sm:$0xff] %v370
  %623 = vst [vmem:[%s2 + $0x10] sm:$0xff] %v375
  %624 = vst [vmem:[%s2 + $0x18] sm:$0xff] %v378
  %625 = vst [vmem:[%s2 + $0x20] sm:$0xff] %v383
  %626 = vst [vmem:[%s2 + $0x28] sm:$0xff] %v386
  %627 = vst [vmem:[%s2 + $0x30] sm:$0xff] %v391
  %628 = vst [vmem:[%s2 + $0x38] sm:$0xff] %v394
  %629 = vst [vmem:[%s2 + $0x40] sm:$0xff] %v399
  %630 = vst [vmem:[%s2 + $0x48] sm:$0xff] %v402
  %631 = vst [vmem:[%s2 + $0x50] sm:$0xff] %v407
  %632 = vst [vmem:[%s2 + $0x58] sm:$0xff] %v410
  %633 = vst [vmem:[%s2 + $0x60] sm:$0xff] %v415
  %634 = vst [vmem:[%s2 + $0x68] sm:$0xff] %v418
  %635 = vst [vmem:[%s2 + $0x70] sm:$0xff] %v423
  %636 = vst [vmem:[%s2 + $0x78] sm:$0xff] %v426
  %637 = vst [vmem:[%s2 + $0x80] sm:$0xff] %v431
  %638 = vst [vmem:[%s2 + $0x88] sm:$0xff] %v434
  %639 = vst [vmem:[%s2 + $0x90] sm:$0xff] %v439
  %640 = vst [vmem:[%s2 + $0x98] sm:$0xff] %v442
  %641 = vst [vmem:[%s2 + $0xa0] sm:$0xff] %v447
  %642 = vst [vmem:[%s2 + $0xa8] sm:$0xff] %v450
  %643 = vst [vmem:[%s2 + $0xb0] sm:$0xff] %v455
  %644 = vst [vmem:[%s2 + $0xb8] sm:$0xff] %v458
  %645 = vst [vmem:[%s2 + $0xc0] sm:$0xff] %v463
  %646 = vst [vmem:[%s2 + $0xc8] sm:$0xff] %v466
  %647 = vst [vmem:[%s2 + $0xd0] sm:$0xff] %v471
  %648 = vst [vmem:[%s2 + $0xd8] sm:$0xff] %v474
  %649 = vst [vmem:[%s2 + $0xe0] sm:$0xff] %v479
  %650 = vst [vmem:[%s2 + $0xe8] sm:$0xff] %v482
  %651 = vst [vmem:[%s2 + $0xf0] sm:$0xff] %v487
  %652 = vst [vmem:[%s2 + $0xf8] sm:$0xff] %v490
  %653 = vst [vmem:[%s2 + $0x100] sm:$0xff] %v495
  %654 = vst [vmem:[%s2 + $0x108] sm:$0xff] %v498
  %655 = vst [vmem:[%s2 + $0x110] sm:$0xff] %v503
  %656 = vst [vmem:[%s2 + $0x118] sm:$0xff] %v506
  %657 = vst [vmem:[%s2 + $0x120] sm:$0xff] %v511
  %658 = vst [vmem:[%s2 + $0x128] sm:$0xff] %v514
  %659 = vst [vmem:[%s2 + $0x130] sm:$0xff] %v519
  %660 = vst [vmem:[%s2 + $0x138] sm:$0xff] %v522
  %661 = vst [vmem:[%s2 + $0x140] sm:$0xff] %v527
  %662 = vst [vmem:[%s2 + $0x148] sm:$0xff] %v530
  %663 = vst [vmem:[%s2 + $0x150] sm:$0xff] %v535
  %664 = vst [vmem:[%s2 + $0x158] sm:$0xff] %v538
  %665 = vst [vmem:[%s2 + $0x160] sm:$0xff] %v543
  %666 = vst [vmem:[%s2 + $0x168] sm:$0xff] %v546
  %667 = vst [vmem:[%s2 + $0x170] sm:$0xff] %v551
  %668 = vst [vmem:[%s2 + $0x178] sm:$0xff] %v554
  %669 = vst [vmem:[%s2 + $0x180] sm:$0xff] %v559
  %670 = vst [vmem:[%s2 + $0x188] sm:$0xff] %v562
  %671 = vst [vmem:[%s2 + $0x190] sm:$0xff] %v567
  %672 = vst [vmem:[%s2 + $0x198] sm:$0xff] %v570
  %673 = vst [vmem:[%s2 + $0x1a0] sm:$0xff] %v575
  %674 = vst [vmem:[%s2 + $0x1a8] sm:$0xff] %v578
  %675 = vst [vmem:[%s2 + $0x1b0] sm:$0xff] %v583
  %676 = vst [vmem:[%s2 + $0x1b8] sm:$0xff] %v586
  %677 = vst [vmem:[%s2 + $0x1c0] sm:$0xff] %v591
  %678 = vst [vmem:[%s2 + $0x1c8] sm:$0xff] %v594
  %679 = vst [vmem:[%s2 + $0x1d0] sm:$0xff] %v599
  %680 = vst [vmem:[%s2 + $0x1d8] sm:$0xff] %v602
  %681 = vst [vmem:[%s2 + $0x1e0] sm:$0xff] %v607
  %682 = vst [vmem:[%s2 + $0x1e8] sm:$0xff] %v610
  %683 = vst [vmem:[%s2 + $0x1f0] sm:$0xff] %v615
  %684 = vst [vmem:[%s2 + $0x1f8] sm:$0xff] %v618
  // Predicated region
  $region10: #{_lambda_.14} parent=0 // pred_check
    _
  $region11: #{_lambda_.14} parent=0 // pred_check_branch
    %686 = sbr.rel (0) target = $region13
  $region12: #{_lambda_.14} parent=0 // pred_region
    _
  $region13: #{_lambda_.14} parent=0 // pred_fallthru
    _
  // Predicated region
  $region14: #{_lambda_.14} parent=0 // pred_check
    _
  $region15: #{_lambda_.14} parent=0 // pred_check_branch
    %688 = sbr.rel (0) target = $region17
  $region16: #{_lambda_.14} parent=0 // pred_region
    _
  $region17: #{_lambda_.14} parent=0 // pred_fallthru
    _

// kernel: tile.68
$region0: #{tile.68}
  #allocation0 [shape = 's32[1]{0}', space=sflag, size = 0x4, scoped, tag = 'scoped memory for tile.68']
  %s0 = inlined_call_operand.vmem [shape: f32[3], index: 0, kind: input, shape index: {}]
  %s1 = inlined_call_operand.vmem [shape: f32[32,3], index: 1, kind: output, shape index: {}]
  // Predicated region
  $region2: #{tile.68} parent=0 // pred_check
    _
  $region3: #{tile.68} parent=0 // pred_check_branch
    %3 = sbr.rel (0) target = $region5
  $region4: #{tile.68} parent=0 // pred_region
    _
  $region5: #{tile.68} parent=0 // pred_fallthru
    _
  %v4 = vld [vmem:[%s0] ss:$0 sm:$0xff]
  %5 = vst [vmem:[%s1] sm:$0xff] %v4
  %s6 = scalar_lea.vmem %s1, 8
  %7 = vst [vmem:[%s6] sm:$0xff] %v4
  %s8 = scalar_lea.vmem %s1, 16
  %9 = vst [vmem:[%s8] sm:$0xff] %v4
  %s10 = scalar_lea.vmem %s1, 24
  %11 = vst [vmem:[%s10] sm:$0xff] %v4

// kernel: tile.69
$region0: #{tile.69}
  %s0 = inlined_call_operand.vmem [shape: f32[32,3], index: 0, kind: input, shape index: {}]
  %s1 = inlined_call_operand.vmem [shape: f32[96], index: 1, kind: output, shape index: {}]
  $region1: #{tile.69} parent=0
    #allocation0 [shape = 'u8[4096]{0}', space=vmem, size = 0x1000, scoped, tag = 'scoped mem for output reshape']
    %v2 = vld [vmem:[%s0] sm:$0x1]
    %vm3 = vcmask 23552
    %4 = vst.msk [vmem:[#allocation0] sm:$0x1] %vm3, %v2
    %s5 = scalar_lea.vmem %s0, 31
    %v6 = vld [vmem:[%s5] sm:$0x1]
    %7 = vrot.lane.b32.xlu0 %v6, 93
    %v8 = vpop.permute.xlu0 %7
    %vm9 = vcmask 786152
    %10 = vst.msk [vmem:[#allocation0] sm:$0x1] %vm9, %v8
    %s11 = scalar_lea.vmem %s0, 30
    %v12 = vld [vmem:[%s11] sm:$0x1]
    %13 = vrot.lane.b32.xlu0 %v12, 90
    %v14 = vpop.permute.xlu0 %13
    %vm15 = vcmask 761552
    %16 = vst.msk [vmem:[#allocation0] sm:$0x1] %vm15, %v14
    %s17 = scalar_lea.vmem %s0, 29
    %v18 = vld [vmem:[%s17] sm:$0x1]
    %19 = vrot.lane.b32.xlu0 %v18, 87
    %v20 = vpop.permute.xlu0 %19
    %vm21 = vcmask 736952
    %22 = vst.msk [vmem:[#allocation0] sm:$0x1] %vm21, %v20
    %s23 = scalar_lea.vmem %s0, 28
    %v24 = vld [vmem:[%s23] sm:$0x1]
    %25 = vrot.lane.b32.xlu0 %v24, 84
    %v26 = vpop.permute.xlu0 %25
    %vm27 = vcmask 712352
    %28 = vst.msk [vmem:[#allocation0] sm:$0x1] %vm27, %v26
    %s29 = scalar_lea.vmem %s0, 27
    %v30 = vld [vmem:[%s29] sm:$0x1]
    %31 = vrot.lane.b32.xlu0 %v30, 81
    %v32 = vpop.permute.xlu0 %31
    %vm33 = vcmask 687752
    %34 = vst.msk [vmem:[#allocation0] sm:$0x1] %vm33, %v32
    %s35 = scalar_lea.vmem %s0, 26
    %v36 = vld [vmem:[%s35] sm:$0x1]
    %37 = vrot.lane.b32.xlu0 %v36, 78
    %v38 = vpop.permute.xlu0 %37
    %vm39 = vcmask 663152
    %40 = vst.msk [vmem:[#allocation0] sm:$0x1] %vm39, %v38
    %s41 = scalar_lea.vmem %s0, 25
    %v42 = vld [vmem:[%s41] sm:$0x1]
    %43 = vrot.lane.b32.xlu0 %v42, 75
    %v44 = vpop.permute.xlu0 %43
    %vm45 = vcmask 638552
    %46 = vst.msk [vmem:[#allocation0] sm:$0x1] %vm45, %v44
    %s47 = scalar_lea.vmem %s0, 24
    %v48 = vld [vmem:[%s47] sm:$0x1]
    %49 = vrot.lane.b32.xlu0 %v48, 72
    %v50 = vpop.permute.xlu0 %49
    %vm51 = vcmask 613952
    %52 = vst.msk [vmem:[#allocation0] sm:$0x1] %vm51, %v50
    %s53 = scalar_lea.vmem %s0, 23
    %v54 = vld [vmem:[%s53] sm:$0x1]
    %55 = vrot.lane.b32.xlu0 %v54, 69
    %v56 = vpop.permute.xlu0 %55
    %vm57 = vcmask 589352
    %58 = vst.msk [vmem:[#allocation0] sm:$0x1] %vm57, %v56
    %s59 = scalar_lea.vmem %s0, 22
    %v60 = vld [vmem:[%s59] sm:$0x1]
    %61 = vrot.lane.b32.xlu0 %v60, 66
    %v62 = vpop.permute.xlu0 %61
    %vm63 = vcmask 564752
    %64 = vst.msk [vmem:[#allocation0] sm:$0x1] %vm63, %v62
    %s65 = scalar_lea.vmem %s0, 21
    %v66 = vld [vmem:[%s65] sm:$0x1]
    %67 = vrot.lane.b32.xlu0 %v66, 63
    %v68 = vpop.permute.xlu0 %67
    %vm69 = vcmask 540152
    %70 = vst.msk [vmem:[#allocation0] sm:$0x1] %vm69, %v68
    %s71 = scalar_lea.vmem %s0, 20
    %v72 = vld [vmem:[%s71] sm:$0x1]
    %73 = vrot.lane.b32.xlu0 %v72, 60
    %v74 = vpop.permute.xlu0 %73
    %vm75 = vcmask 515552
    %76 = vst.msk [vmem:[#allocation0] sm:$0x1] %vm75, %v74
    %s77 = scalar_lea.vmem %s0, 19
    %v78 = vld [vmem:[%s77] sm:$0x1]
    %79 = vrot.lane.b32.xlu0 %v78, 57
    %v80 = vpop.permute.xlu0 %79
    %vm81 = vcmask 490952
    %82 = vst.msk [vmem:[#allocation0] sm:$0x1] %vm81, %v80
    %s83 = scalar_lea.vmem %s0, 18
    %v84 = vld [vmem:[%s83] sm:$0x1]
    %85 = vrot.lane.b32.xlu0 %v84, 54
    %v86 = vpop.permute.xlu0 %85
    %vm87 = vcmask 466352
    %88 = vst.msk [vmem:[#allocation0] sm:$0x1] %vm87, %v86
    %s89 = scalar_lea.vmem %s0, 17
    %v90 = vld [vmem:[%s89] sm:$0x1]
    %91 = vrot.lane.b32.xlu0 %v90, 51
    %v92 = vpop.permute.xlu0 %91
    %vm93 = vcmask 441752
    %94 = vst.msk [vmem:[#allocation0] sm:$0x1] %vm93, %v92
    %s95 = scalar_lea.vmem %s0, 16
    %v96 = vld [vmem:[%s95] sm:$0x1]
    %97 = vrot.lane.b32.xlu0 %v96, 48
    %v98 = vpop.permute.xlu0 %97
    %vm99 = vcmask 417152
    %100 = vst.msk [vmem:[#allocation0] sm:$0x1] %vm99, %v98
    %s101 = scalar_lea.vmem %s0, 15
    %v102 = vld [vmem:[%s101] sm:$0x1]
    %103 = vrot.lane.b32.xlu0 %v102, 45
    %v104 = vpop.permute.xlu0 %103
    %vm105 = vcmask 392552
    %106 = vst.msk [vmem:[#allocation0] sm:$0x1] %vm105, %v104
    %s107 = scalar_lea.vmem %s0, 14
    %v108 = vld [vmem:[%s107] sm:$0x1]
    %109 = vrot.lane.b32.xlu0 %v108, 42
    %v110 = vpop.permute.xlu0 %109
    %vm111 = vcmask 367952
    %112 = vst.msk [vmem:[#allocation0] sm:$0x1] %vm111, %v110
    %s113 = scalar_lea.vmem %s0, 13
    %v114 = vld [vmem:[%s113] sm:$0x1]
    %115 = vrot.lane.b32.xlu0 %v114, 39
    %v116 = vpop.permute.xlu0 %115
    %vm117 = vcmask 343352
    %118 = vst.msk [vmem:[#allocation0] sm:$0x1] %vm117, %v116
    %s119 = scalar_lea.vmem %s0, 12
    %v120 = vld [vmem:[%s119] sm:$0x1]
    %121 = vrot.lane.b32.xlu0 %v120, 36
    %v122 = vpop.permute.xlu0 %121
    %vm123 = vcmask 318752
    %124 = vst.msk [vmem:[#allocation0] sm:$0x1] %vm123, %v122
    %s125 = scalar_lea.vmem %s0, 11
    %v126 = vld [vmem:[%s125] sm:$0x1]
    %127 = vrot.lane.b32.xlu0 %v126, 33
    %v128 = vpop.permute.xlu0 %127
    %vm129 = vcmask 294152
    %130 = vst.msk [vmem:[#allocation0] sm:$0x1] %vm129, %v128
    %s131 = scalar_lea.vmem %s0, 10
    %v132 = vld [vmem:[%s131] sm:$0x1]
    %133 = vrot.lane.b32.xlu0 %v132, 30
    %v134 = vpop.permute.xlu0 %133
    %vm135 = vcmask 269552
    %136 = vst.msk [vmem:[#allocation0] sm:$0x1] %vm135, %v134
    %s137 = scalar_lea.vmem %s0, 9
    %v138 = vld [vmem:[%s137] sm:$0x1]
    %139 = vrot.lane.b32.xlu0 %v138, 27
    %v140 = vpop.permute.xlu0 %139
    %vm141 = vcmask 244952
    %142 = vst.msk [vmem:[#allocation0] sm:$0x1] %vm141, %v140
    %s143 = scalar_lea.vmem %s0, 8
    %v144 = vld [vmem:[%s143] sm:$0x1]
    %145 = vrot.lane.b32.xlu0 %v144, 24
    %v146 = vpop.permute.xlu0 %145
    %vm147 = vcmask 220352
    %148 = vst.msk [vmem:[#allocation0] sm:$0x1] %vm147, %v146
    %s149 = scalar_lea.vmem %s0, 7
    %v150 = vld [vmem:[%s149] sm:$0x1]
    %151 = vrot.lane.b32.xlu0 %v150, 21
    %v152 = vpop.permute.xlu0 %151
    %vm153 = vcmask 195752
    %154 = vst.msk [vmem:[#allocation0] sm:$0x1] %vm153, %v152
    %s155 = scalar_lea.vmem %s0, 6
    %v156 = vld [vmem:[%s155] sm:$0x1]
    %157 = vrot.lane.b32.xlu0 %v156, 18
    %v158 = vpop.permute.xlu0 %157
    %vm159 = vcmask 171152
    %160 = vst.msk [vmem:[#allocation0] sm:$0x1] %vm159, %v158
    %s161 = scalar_lea.vmem %s0, 5
    %v162 = vld [vmem:[%s161] sm:$0x1]
    %163 = vrot.lane.b32.xlu0 %v162, 15
    %v164 = vpop.permute.xlu0 %163
    %vm165 = vcmask 146552
    %166 = vst.msk [vmem:[#allocation0] sm:$0x1] %vm165, %v164
    %s167 = scalar_lea.vmem %s0, 4
    %v168 = vld [vmem:[%s167] sm:$0x1]
    %169 = vrot.lane.b32.xlu0 %v168, 12
    %v170 = vpop.permute.xlu0 %169
    %vm171 = vcmask 121952
    %172 = vst.msk [vmem:[#allocation0] sm:$0x1] %vm171, %v170
    %s173 = scalar_lea.vmem %s0, 3
    %v174 = vld [vmem:[%s173] sm:$0x1]
    %175 = vrot.lane.b32.xlu0 %v174, 9
    %v176 = vpop.permute.xlu0 %175
    %vm177 = vcmask 97352
    %178 = vst.msk [vmem:[#allocation0] sm:$0x1] %vm177, %v176
    %s179 = scalar_lea.vmem %s0, 2
    %v180 = vld [vmem:[%s179] sm:$0x1]
    %181 = vrot.lane.b32.xlu0 %v180, 6
    %v182 = vpop.permute.xlu0 %181
    %vm183 = vcmask 72752
    %184 = vst.msk [vmem:[#allocation0] sm:$0x1] %vm183, %v182
    %s185 = scalar_lea.vmem %s0, 1
    %v186 = vld [vmem:[%s185] sm:$0x1]
    %187 = vrot.lane.b32.xlu0 %v186, 3
    %v188 = vpop.permute.xlu0 %187
    %vm189 = vcmask 48152
    %190 = vst.msk [vmem:[#allocation0] sm:$0x1] %vm189, %v188
    %s192 = sshll.u32 1, 1
    %s193 = ssub.s32 %s192, 1
    %v195 = vld [vmem:[#allocation0] sm:%s193]
    %s196 = sshll.u32 1, 1
    %s197 = ssub.s32 %s196, 1
    %198 = vst [vmem:[%s1] sm:%s197] %v195

// kernel: tile.35
$region0: #{tile.35}
  #allocation0 [shape = 's32[1]{0}', space=sflag, size = 0x4, scoped, tag = 'scoped memory for tile.35']
  %s0 = inlined_call_operand.<no memory space> [shape: f32[], index: 0, kind: input, shape index: {}]
  %s1 = inlined_call_operand.vmem [shape: f32[96], index: 1, kind: output, shape index: {}]
  %v2 = vstv %s0
  %3 = vst [vmem:[%s1] sm:$0x1] %v2

// kernel: _lambda_.15
$region0: #{_lambda_.15}
  #allocation0 [shape = 'u32[]', space=smem, size = 0x4, offset = 0x4, fixed_abs, tag = 'smem constant byte address 0x4 - core index']
  #allocation1 [shape = 'u32[144,128]{1,0:T(1,128)}', space=vmem, size = 0x12000, scoped, tag = 'internal scratch']
  %s0 = inlined_call_operand.vmem [shape: f32[64,128], index: 0, kind: input, shape index: {}]
  %s1 = inlined_call_operand.vmem [shape: f32[1,128], index: 1, kind: input, shape index: {}]
  %s2 = inlined_call_operand.vmem [shape: f32[1,128], index: 2, kind: input, shape index: {}]
  %s3 = inlined_call_operand.vmem [shape: f32[64,128], index: 3, kind: output, shape index: {}]
  %s4 = sld [smem:[#allocation0]]
  $region22: #{_lambda_.15} parent=0
    _
  %s6 = ssub.s32 1, %s4
  %s7 = scalar_select 0, %s6, %s4
  // Predicated region
  $region2: #{_lambda_.15} parent=0 // pred_check
    _
  $region3: #{_lambda_.15} parent=0 // pred_check_branch
    %9 = sbr.rel (0) target = $region5
  $region4: #{_lambda_.15} parent=0 // pred_region
    _
  $region5: #{_lambda_.15} parent=0 // pred_fallthru
    _
  // Predicated region
  $region6: #{_lambda_.15} parent=0 // pred_check
    _
  $region7: #{_lambda_.15} parent=0 // pred_check_branch
    %11 = sbr.rel (0) target = $region9
  $region8: #{_lambda_.15} parent=0 // pred_region
    _
  $region9: #{_lambda_.15} parent=0 // pred_fallthru
    _
  // Predicated region
  $region10: #{_lambda_.15} parent=0 // pred_check
    _
  $region11: #{_lambda_.15} parent=0 // pred_check_branch
    %13 = sbr.rel (0) target = $region13
  $region12: #{_lambda_.15} parent=0 // pred_region
    _
  $region13: #{_lambda_.15} parent=0 // pred_fallthru
    _
  %v14 = vld [vmem:[%s0] sm:$0xff]
  %v15 = vld [vmem:[%s0 + $0x8] sm:$0xff]
  %v16 = vld [vmem:[%s0 + $0x10] sm:$0xff]
  %v17 = vld [vmem:[%s0 + $0x18] sm:$0xff]
  %v18 = vld [vmem:[%s0 + $0x20] sm:$0xff]
  %v19 = vld [vmem:[%s0 + $0x28] sm:$0xff]
  %v20 = vld [vmem:[%s0 + $0x30] sm:$0xff]
  %v21 = vld [vmem:[%s0 + $0x38] sm:$0xff]
  %v22 = vld [vmem:[%s1] sm:$0x1]
  %v24 = vlaneseq
  %v25 = vshrl.u32 %v24, 7
  %v26 = vsub.s32 0, %v25
  %v27 = vrot.slane %v22, %v26
  %v29 = vmul.f32 %v14, %v27
  %v30 = vmul.f32 %v15, %v27
  %v31 = vmul.f32 %v16, %v27
  %v32 = vmul.f32 %v17, %v27
  %v33 = vmul.f32 %v18, %v27
  %v34 = vmul.f32 %v19, %v27
  %v35 = vmul.f32 %v20, %v27
  %v36 = vmul.f32 %v21, %v27
  %v37 = vld [vmem:[%s2] sm:$0x1]
  %v39 = vlaneseq
  %v40 = vshrl.u32 %v39, 7
  %v41 = vsub.s32 0, %v40
  %v42 = vrot.slane %v37, %v41
  %v44 = vadd.f32 %v29, %v42
  %v45 = vadd.f32 %v30, %v42
  %v46 = vadd.f32 %v31, %v42
  %v47 = vadd.f32 %v32, %v42
  %v48 = vadd.f32 %v33, %v42
  %v49 = vadd.f32 %v34, %v42
  %v50 = vadd.f32 %v35, %v42
  %v51 = vadd.f32 %v36, %v42
  %v52 = vtanh.pop %v44
  %v53 = vtanh.pop %v45
  %v54 = vtanh.pop %v46
  %v55 = vtanh.pop %v47
  %v56 = vtanh.pop %v48
  %v57 = vtanh.pop %v49
  %v58 = vtanh.pop %v50
  %v59 = vtanh.pop %v51
  %60 = vst [vmem:[%s3] sm:$0xff] %v52
  %61 = vst [vmem:[%s3 + $0x8] sm:$0xff] %v53
  %62 = vst [vmem:[%s3 + $0x10] sm:$0xff] %v54
  %63 = vst [vmem:[%s3 + $0x18] sm:$0xff] %v55
  %64 = vst [vmem:[%s3 + $0x20] sm:$0xff] %v56
  %65 = vst [vmem:[%s3 + $0x28] sm:$0xff] %v57
  %66 = vst [vmem:[%s3 + $0x30] sm:$0xff] %v58
  %67 = vst [vmem:[%s3 + $0x38] sm:$0xff] %v59
  // Predicated region
  $region14: #{_lambda_.15} parent=0 // pred_check
    _
  $region15: #{_lambda_.15} parent=0 // pred_check_branch
    %69 = sbr.rel (0) target = $region17
  $region16: #{_lambda_.15} parent=0 // pred_region
    _
  $region17: #{_lambda_.15} parent=0 // pred_fallthru
    _
  // Predicated region
  $region18: #{_lambda_.15} parent=0 // pred_check
    _
  $region19: #{_lambda_.15} parent=0 // pred_check_branch
    %71 = sbr.rel (0) target = $region21
  $region20: #{_lambda_.15} parent=0 // pred_region
    _
  $region21: #{_lambda_.15} parent=0 // pred_fallthru
    _

</llo_original>
